<compile_context>
chip_gen: v7x
topology: tpu7x:2x2x1
jax: 0.10.0
libtpu: 0.0.40
codegen_flags: <defaults>
</compile_context>

<pallas_src>
import jax
import jax.numpy as jnp
from jax.experimental import pallas as pl
from jax.experimental.pallas import tpu as pltpu

TM_CAP = 512  # sweepable batch-tile cap (multiple of 128 for large batches)


def actor_kernel(x_ref, w1_ref, b1_ref, w2_ref, b2_ref,
                 wmu_ref, bmu_ref, wls_ref, bls_ref,
                 mu_ref, ls_ref):
    # fc1 + relu (bf16 operands, f32 accumulation, f32 elementwise)
    x = x_ref[...].astype(jnp.bfloat16)
    h1 = jnp.dot(x, w1_ref[...], preferred_element_type=jnp.float32) + b1_ref[...]
    h1 = jnp.maximum(h1, 0.0).astype(jnp.bfloat16)

    # fc2 + relu
    h2 = jnp.dot(h1, w2_ref[...], preferred_element_type=jnp.float32) + b2_ref[...]
    h2 = jnp.maximum(h2, 0.0).astype(jnp.bfloat16)

    # mu / log_std heads (narrow-N matmuls; MXU is nowhere near the bottleneck)
    mu = jnp.dot(h2, wmu_ref[...], preferred_element_type=jnp.float32) + bmu_ref[...]
    ls = jnp.dot(h2, wls_ref[...], preferred_element_type=jnp.float32) + bls_ref[...]

    mu_ref[...] = mu.astype(mu_ref.dtype)
    ls_ref[...] = jnp.clip(ls, -20.0, 2.0).astype(ls_ref.dtype)


def _choose_tiling(B):
    """Power-of-two batch bucket (bounds recompiles) + tile / grid choice."""
    b_pad = max(8, 1 << (B - 1).bit_length())
    tm = min(TM_CAP, b_pad)
    # Ensure >= 2 grid tiles for larger batches so both v7x TensorCores get
    # work under dimension_semantics=("parallel",). Costs at most one extra
    # ~0.35us grid step on single-TC chips.
    if b_pad >= 256:
        tm = min(tm, b_pad // 2)
    grid = b_pad // tm
    return b_pad, tm, grid


def _pallas_forward(state_p, weights, *, b_pad, tm, grid, state_dim,
                    action_dim, hidden_dim, single_buffer_weights):
    if single_buffer_weights:
        w_kwargs = dict(pipeline_mode=pl.Buffered(1))
    else:
        w_kwargs = {}

    in_specs = [pl.BlockSpec((tm, state_dim), lambda i: (i, 0))]
    in_specs += [pl.BlockSpec(w.shape, lambda i: (0, 0), **w_kwargs)
                 for w in weights]
    out_specs = (
        pl.BlockSpec((tm, action_dim), lambda i: (i, 0)),
        pl.BlockSpec((tm, action_dim), lambda i: (i, 0)),
    )
    out_shape = (
        jax.ShapeDtypeStruct((b_pad, action_dim), jnp.float32),
        jax.ShapeDtypeStruct((b_pad, action_dim), jnp.float32),
    )

    # VMEM budget: double-buffered I/O tiles + weights (single- or double-
    # buffered) + f32/bf16 hidden intermediates + compiler scratch headroom.
    wbytes = sum(int(w.size) * jnp.dtype(w.dtype).itemsize for w in weights)
    wbufs = 1 if single_buffer_weights else 2
    footprint = (2 * tm * state_dim * 4            # input tiles (x2 buffers)
                 + 2 * 2 * tm * action_dim * 4     # two output tiles (x2 buffers)
                 + wbufs * wbytes                  # weights / biases
                 + 3 * tm * hidden_dim * 4)        # h1/h2 f32 + bf16 temporaries
    vmem_limit = int(min(max(footprint + (2 << 20), 4 << 20), 48 << 20))

    return pl.pallas_call(
        actor_kernel,
        out_shape=out_shape,
        grid=(grid,),
        in_specs=in_specs,
        out_specs=out_specs,
        compiler_params=pltpu.CompilerParams(
            dimension_semantics=("parallel",),
            vmem_limit_bytes=vmem_limit,
        ),
    )(state_p, *weights)


def actor_forward(state, params):
    """state: (B, state_dim) f32 -> (mu, log_std), each (B, action_dim) f32."""
    B, state_dim = state.shape
    action_dim = params["action_dim"]
    hidden_dim = params["w1"].shape[1]

    b_pad, tm, grid = _choose_tiling(B)
    state_p = state if b_pad == B else jnp.pad(state, ((0, b_pad - B), (0, 0)))

    weights = (params["w1"], params["b1"], params["w2"], params["b2"],
               params["wmu"], params["bmu"], params["wls"], params["bls"])

    kwargs = dict(b_pad=b_pad, tm=tm, grid=grid, state_dim=state_dim,
                  action_dim=action_dim, hidden_dim=hidden_dim)
    try:
        mu, log_std = _pallas_forward(state_p, weights,
                                      single_buffer_weights=True, **kwargs)
    except Exception:
        # Fallback if this JAX build rejects pipeline_mode=pl.Buffered(1).
        mu, log_std = _pallas_forward(state_p, weights,
                                      single_buffer_weights=False, **kwargs)

    if b_pad != B:
        mu, log_std = mu[:B], log_std[:B]
    return mu, log_std


def init_actor_params(key, state_dim, action_dim, hidden_dim=256):
    """Init mirroring nn.Linear (weights stored transposed, bf16; f32 biases)."""
    ks = jax.random.split(key, 8)

    def linear(kw, kb, fan_in, fan_out):
        bound = 1.0 / jnp.sqrt(fan_in)
        w = jax.random.uniform(kw, (fan_in, fan_out), jnp.float32, -bound, bound)
        b = jax.random.uniform(kb, (1, fan_out), jnp.float32, -bound, bound)
        return w.astype(jnp.bfloat16), b

    w1, b1 = linear(ks[0], ks[1], state_dim, hidden_dim)
    w2, b2 = linear(ks[2], ks[3], hidden_dim, hidden_dim)
    wmu, bmu = linear(ks[4], ks[5], hidden_dim, action_dim)
    wls, bls = linear(ks[6], ks[7], hidden_dim, action_dim)

    return dict(w1=w1, b1=b1, w2=w2, b2=b2,
                wmu=wmu, bmu=bmu, wls=wls, bls=bls,
                action_dim=action_dim)


def actor_forward_ref(state, p):
    """Plain-JAX reference mirroring the kernel's bf16/f32 precision."""
    x = state.astype(jnp.bfloat16)
    h1 = jnp.maximum(jnp.dot(x, p["w1"], preferred_element_type=jnp.float32) + p["b1"], 0.0)
    h1 = h1.astype(jnp.bfloat16)
    h2 = jnp.maximum(jnp.dot(h1, p["w2"], preferred_element_type=jnp.float32) + p["b2"], 0.0)
    h2 = h2.astype(jnp.bfloat16)
    mu = jnp.dot(h2, p["wmu"], preferred_element_type=jnp.float32) + p["bmu"]
    ls = jnp.clip(jnp.dot(h2, p["wls"], preferred_element_type=jnp.float32) + p["bls"],
                  -20.0, 2.0)
    return mu, ls


if __name__ == "__main__":
    key = jax.random.PRNGKey(0)
    k_param, k_state, k_big = jax.random.split(key, 3)

    batch = 8
    state_dim = 16
    action_dim = 8
    hidden_dim = 256  # module default

    params = init_actor_params(k_param, state_dim, action_dim, hidden_dim)

    # Small-shape run (single tile).
    state = jax.random.normal(k_state, (batch, state_dim), jnp.float32)
    mu, log_std = actor_forward(state, params)
    jax.block_until_ready((mu, log_std))

    mu_ref, ls_ref = actor_forward_ref(state, params)
    assert mu.shape == (batch, action_dim) and log_std.shape == (batch, action_dim)
    assert jnp.allclose(mu, mu_ref, atol=2e-2, rtol=2e-2)
    assert jnp.allclose(log_std, ls_ref, atol=2e-2, rtol=2e-2)
    assert bool(jnp.all(log_std >= -20.0)) and bool(jnp.all(log_std <= 2.0))

    # Multi-tile path (grid >= 2 so both v7x TensorCores are exercised).
    big = jax.random.normal(k_big, (1024, state_dim), jnp.float32)
    mu_b, ls_b = actor_forward(big, params)
    jax.block_until_ready((mu_b, ls_b))
    mu_br, ls_br = actor_forward_ref(big, params)
    assert jnp.allclose(mu_b, mu_br, atol=2e-2, rtol=2e-2)
    assert jnp.allclose(ls_b, ls_br, atol=2e-2, rtol=2e-2)

    # TODO(synk): `Actor.sample` (rsample + tanh-squashed log_prob) is a
    # stochastic method outside forward(); not implemented as a kernel.
    print("KERNEL_OK")
</pallas_src>

<mosaic_0001>
module attributes {stable_mosaic.version = 11 : i64} {
  func.func @actor_kernel(%arg0: i32, %arg1: memref<8x16xf32, #tpu.memory_space<vmem>>, %arg2: memref<16x256xbf16, #tpu.memory_space<vmem>>, %arg3: memref<1x256xf32, #tpu.memory_space<vmem>>, %arg4: memref<256x256xbf16, #tpu.memory_space<vmem>>, %arg5: memref<1x256xf32, #tpu.memory_space<vmem>>, %arg6: memref<256x8xbf16, #tpu.memory_space<vmem>>, %arg7: memref<1x8xf32, #tpu.memory_space<vmem>>, %arg8: memref<256x8xbf16, #tpu.memory_space<vmem>>, %arg9: memref<1x8xf32, #tpu.memory_space<vmem>>, %arg10: memref<8x8xf32, #tpu.memory_space<vmem>>, %arg11: memref<8x8xf32, #tpu.memory_space<vmem>>) attributes {dimension_semantics = [#tpu.dimension_semantics<parallel>], iteration_bounds = array<i64: 1>, scalar_prefetch = 0 : i64, scratch_operands = 0 : i64, tpu.core_type = #tpu.core_type<tc>, window_params = [{transform_indices = @transform_0, window_bounds = array<i64: 8, 16>}, {pipeline_mode = #tpu.pipeline_mode<synchronous>, transform_indices = @transform_1, window_bounds = array<i64: 16, 256>}, {pipeline_mode = #tpu.pipeline_mode<synchronous>, transform_indices = @transform_2, window_bounds = array<i64: 1, 256>}, {pipeline_mode = #tpu.pipeline_mode<synchronous>, transform_indices = @transform_3, window_bounds = array<i64: 256, 256>}, {pipeline_mode = #tpu.pipeline_mode<synchronous>, transform_indices = @transform_4, window_bounds = array<i64: 1, 256>}, {pipeline_mode = #tpu.pipeline_mode<synchronous>, transform_indices = @transform_5, window_bounds = array<i64: 256, 8>}, {pipeline_mode = #tpu.pipeline_mode<synchronous>, transform_indices = @transform_6, window_bounds = array<i64: 1, 8>}, {pipeline_mode = #tpu.pipeline_mode<synchronous>, transform_indices = @transform_7, window_bounds = array<i64: 256, 8>}, {pipeline_mode = #tpu.pipeline_mode<synchronous>, transform_indices = @transform_8, window_bounds = array<i64: 1, 8>}, {transform_indices = @transform_9, window_bounds = array<i64: 8, 8>}, {transform_indices = @transform_10, window_bounds = array<i64: 8, 8>}]} {
    %c0 = arith.constant 0 : index
    %c0_0 = arith.constant 0 : index
    %0 = vector.load %arg1[%c0, %c0_0] : memref<8x16xf32, #tpu.memory_space<vmem>>, vector<8x16xf32>
    %1 = arith.truncf %0 : vector<8x16xf32> to vector<8x16xbf16>
    %c0_1 = arith.constant 0 : index
    %c0_2 = arith.constant 0 : index
    %2 = vector.load %arg2[%c0_1, %c0_2] : memref<16x256xbf16, #tpu.memory_space<vmem>>, vector<16x256xbf16>
    %cst = arith.constant dense<0.000000e+00> : vector<8x256xf32>
    %3 = tpu.matmul %1, %2, %cst {dimension_numbers = #tpu.dot_dimension_numbers<[1], [0], [0], [1], [0, 0, 1, 1], [], []>} : vector<8x16xbf16>, vector<16x256xbf16>, vector<8x256xf32> -> vector<8x256xf32>
    %c0_3 = arith.constant 0 : index
    %c0_4 = arith.constant 0 : index
    %4 = vector.load %arg3[%c0_3, %c0_4] : memref<1x256xf32, #tpu.memory_space<vmem>>, vector<1x256xf32>
    %5 = vector.broadcast %4 : vector<1x256xf32> to vector<8x256xf32>
    %6 = arith.addf %3, %5 : vector<8x256xf32>
    %cst_5 = arith.constant 0.000000e+00 : f32
    %7 = vector.broadcast %cst_5 : f32 to vector<8x256xf32>
    %8 = arith.maximumf %6, %7 : vector<8x256xf32>
    %9 = arith.truncf %8 : vector<8x256xf32> to vector<8x256xbf16>
    %c0_6 = arith.constant 0 : index
    %c0_7 = arith.constant 0 : index
    %10 = vector.load %arg4[%c0_6, %c0_7] : memref<256x256xbf16, #tpu.memory_space<vmem>>, vector<256x256xbf16>
    %cst_8 = arith.constant dense<0.000000e+00> : vector<8x256xf32>
    %11 = tpu.matmul %9, %10, %cst_8 {dimension_numbers = #tpu.dot_dimension_numbers<[1], [0], [0], [1], [0, 0, 1, 1], [], []>} : vector<8x256xbf16>, vector<256x256xbf16>, vector<8x256xf32> -> vector<8x256xf32>
    %c0_9 = arith.constant 0 : index
    %c0_10 = arith.constant 0 : index
    %12 = vector.load %arg5[%c0_9, %c0_10] : memref<1x256xf32, #tpu.memory_space<vmem>>, vector<1x256xf32>
    %13 = vector.broadcast %12 : vector<1x256xf32> to vector<8x256xf32>
    %14 = arith.addf %11, %13 : vector<8x256xf32>
    %cst_11 = arith.constant 0.000000e+00 : f32
    %15 = vector.broadcast %cst_11 : f32 to vector<8x256xf32>
    %16 = arith.maximumf %14, %15 : vector<8x256xf32>
    %17 = arith.truncf %16 : vector<8x256xf32> to vector<8x256xbf16>
    %c0_12 = arith.constant 0 : index
    %c0_13 = arith.constant 0 : index
    %18 = vector.load %arg6[%c0_12, %c0_13] : memref<256x8xbf16, #tpu.memory_space<vmem>>, vector<256x8xbf16>
    %cst_14 = arith.constant dense<0.000000e+00> : vector<8x8xf32>
    %19 = tpu.matmul %17, %18, %cst_14 {dimension_numbers = #tpu.dot_dimension_numbers<[1], [0], [0], [1], [0, 0, 1, 1], [], []>} : vector<8x256xbf16>, vector<256x8xbf16>, vector<8x8xf32> -> vector<8x8xf32>
    %c0_15 = arith.constant 0 : index
    %c0_16 = arith.constant 0 : index
    %20 = vector.load %arg7[%c0_15, %c0_16] : memref<1x8xf32, #tpu.memory_space<vmem>>, vector<1x8xf32>
    %21 = vector.broadcast %20 : vector<1x8xf32> to vector<8x8xf32>
    %22 = arith.addf %19, %21 : vector<8x8xf32>
    %c0_17 = arith.constant 0 : index
    %c0_18 = arith.constant 0 : index
    %23 = vector.load %arg8[%c0_17, %c0_18] : memref<256x8xbf16, #tpu.memory_space<vmem>>, vector<256x8xbf16>
    %cst_19 = arith.constant dense<0.000000e+00> : vector<8x8xf32>
    %24 = tpu.matmul %17, %23, %cst_19 {dimension_numbers = #tpu.dot_dimension_numbers<[1], [0], [0], [1], [0, 0, 1, 1], [], []>} : vector<8x256xbf16>, vector<256x8xbf16>, vector<8x8xf32> -> vector<8x8xf32>
    %c0_20 = arith.constant 0 : index
    %c0_21 = arith.constant 0 : index
    %25 = vector.load %arg9[%c0_20, %c0_21] : memref<1x8xf32, #tpu.memory_space<vmem>>, vector<1x8xf32>
    %26 = vector.broadcast %25 : vector<1x8xf32> to vector<8x8xf32>
    %27 = arith.addf %24, %26 : vector<8x8xf32>
    %c0_22 = arith.constant 0 : index
    %c0_23 = arith.constant 0 : index
    %28 = vector.load %arg10[%c0_22, %c0_23] : memref<8x8xf32, #tpu.memory_space<vmem>>, vector<8x8xf32>
    tpu.vector_store %arg10[%c0_22, %c0_23], %22 {strides = array<i32>} : memref<8x8xf32, #tpu.memory_space<vmem>>, vector<8x8xf32>,
    %cst_24 = arith.constant -2.000000e+01 : f32
    %cst_25 = arith.constant 2.000000e+00 : f32
    %29 = vector.broadcast %cst_24 : f32 to vector<8x8xf32>
    %30 = arith.maximumf %29, %27 : vector<8x8xf32>
    %31 = vector.broadcast %cst_25 : f32 to vector<8x8xf32>
    %32 = arith.minimumf %31, %30 : vector<8x8xf32>
    %c0_26 = arith.constant 0 : index
    %c0_27 = arith.constant 0 : index
    %33 = vector.load %arg11[%c0_26, %c0_27] : memref<8x8xf32, #tpu.memory_space<vmem>>, vector<8x8xf32>
    tpu.vector_store %arg11[%c0_26, %c0_27], %32 {strides = array<i32>} : memref<8x8xf32, #tpu.memory_space<vmem>>, vector<8x8xf32>,
    return
  }
  func.func @transform_0(%arg0: i32) -> (i32, i32) {
    %c0_i32 = arith.constant 0 : i32
    %c0_i32_0 = arith.constant 0 : i32
    return %arg0, %c0_i32 : i32, i32
  }
  func.func @transform_1(%arg0: i32) -> (i32, i32) {
    %c0_i32 = arith.constant 0 : i32
    %c0_i32_0 = arith.constant 0 : i32
    %c0_i32_1 = arith.constant 0 : i32
    return %c0_i32, %c0_i32_0 : i32, i32
  }
  func.func @transform_2(%arg0: i32) -> (i32, i32) {
    %c0_i32 = arith.constant 0 : i32
    %c0_i32_0 = arith.constant 0 : i32
    %c0_i32_1 = arith.constant 0 : i32
    return %c0_i32, %c0_i32_0 : i32, i32
  }
  func.func @transform_3(%arg0: i32) -> (i32, i32) {
    %c0_i32 = arith.constant 0 : i32
    %c0_i32_0 = arith.constant 0 : i32
    %c0_i32_1 = arith.constant 0 : i32
    return %c0_i32, %c0_i32_0 : i32, i32
  }
  func.func @transform_4(%arg0: i32) -> (i32, i32) {
    %c0_i32 = arith.constant 0 : i32
    %c0_i32_0 = arith.constant 0 : i32
    %c0_i32_1 = arith.constant 0 : i32
    return %c0_i32, %c0_i32_0 : i32, i32
  }
  func.func @transform_5(%arg0: i32) -> (i32, i32) {
    %c0_i32 = arith.constant 0 : i32
    %c0_i32_0 = arith.constant 0 : i32
    %c0_i32_1 = arith.constant 0 : i32
    return %c0_i32, %c0_i32_0 : i32, i32
  }
  func.func @transform_6(%arg0: i32) -> (i32, i32) {
    %c0_i32 = arith.constant 0 : i32
    %c0_i32_0 = arith.constant 0 : i32
    %c0_i32_1 = arith.constant 0 : i32
    return %c0_i32, %c0_i32_0 : i32, i32
  }
  func.func @transform_7(%arg0: i32) -> (i32, i32) {
    %c0_i32 = arith.constant 0 : i32
    %c0_i32_0 = arith.constant 0 : i32
    %c0_i32_1 = arith.constant 0 : i32
    return %c0_i32, %c0_i32_0 : i32, i32
  }
  func.func @transform_8(%arg0: i32) -> (i32, i32) {
    %c0_i32 = arith.constant 0 : i32
    %c0_i32_0 = arith.constant 0 : i32
    %c0_i32_1 = arith.constant 0 : i32
    return %c0_i32, %c0_i32_0 : i32, i32
  }
  func.func @transform_9(%arg0: i32) -> (i32, i32) {
    %c0_i32 = arith.constant 0 : i32
    %c0_i32_0 = arith.constant 0 : i32
    return %arg0, %c0_i32 : i32, i32
  }
  func.func @transform_10(%arg0: i32) -> (i32, i32) {
    %c0_i32 = arith.constant 0 : i32
    %c0_i32_0 = arith.constant 0 : i32
    return %arg0, %c0_i32 : i32, i32
  }
}

module attributes {stable_mosaic.version = 11 : i64} {
  func.func @actor_kernel(%arg0: i32, %arg1: memref<8x16xf32, #tpu.memory_space<vmem>>, %arg2: memref<16x256xbf16, #tpu.memory_space<vmem>>, %arg3: memref<1x256xf32, #tpu.memory_space<vmem>>, %arg4: memref<256x256xbf16, #tpu.memory_space<vmem>>, %arg5: memref<1x256xf32, #tpu.memory_space<vmem>>, %arg6: memref<256x8xbf16, #tpu.memory_space<vmem>>, %arg7: memref<1x8xf32, #tpu.memory_space<vmem>>, %arg8: memref<256x8xbf16, #tpu.memory_space<vmem>>, %arg9: memref<1x8xf32, #tpu.memory_space<vmem>>, %arg10: memref<8x8xf32, #tpu.memory_space<vmem>>, %arg11: memref<8x8xf32, #tpu.memory_space<vmem>>) attributes {dimension_semantics = [#tpu.dimension_semantics<parallel>], iteration_bounds = array<i64: 1>, scalar_prefetch = 0 : i64, scratch_operands = 0 : i64, tpu.core_type = #tpu.core_type<tc>, window_params = [{transform_indices = @transform_0, window_bounds = array<i64: 8, 16>}, {pipeline_mode = #tpu.pipeline_mode<synchronous>, transform_indices = @transform_1, window_bounds = array<i64: 16, 256>}, {pipeline_mode = #tpu.pipeline_mode<synchronous>, transform_indices = @transform_2, window_bounds = array<i64: 1, 256>}, {pipeline_mode = #tpu.pipeline_mode<synchronous>, transform_indices = @transform_3, window_bounds = array<i64: 256, 256>}, {pipeline_mode = #tpu.pipeline_mode<synchronous>, transform_indices = @transform_4, window_bounds = array<i64: 1, 256>}, {pipeline_mode = #tpu.pipeline_mode<synchronous>, transform_indices = @transform_5, window_bounds = array<i64: 256, 8>}, {pipeline_mode = #tpu.pipeline_mode<synchronous>, transform_indices = @transform_6, window_bounds = array<i64: 1, 8>}, {pipeline_mode = #tpu.pipeline_mode<synchronous>, transform_indices = @transform_7, window_bounds = array<i64: 256, 8>}, {pipeline_mode = #tpu.pipeline_mode<synchronous>, transform_indices = @transform_8, window_bounds = array<i64: 1, 8>}, {transform_indices = @transform_9, window_bounds = array<i64: 8, 8>}, {transform_indices = @transform_10, window_bounds = array<i64: 8, 8>}]} {
    %c0 = arith.constant 0 : index
    %c0_0 = arith.constant 0 : index
    %0 = vector.load %arg1[%c0, %c0_0] : memref<8x16xf32, #tpu.memory_space<vmem>>, vector<8x16xf32>
    %1 = arith.truncf %0 : vector<8x16xf32> to vector<8x16xbf16>
    %c0_1 = arith.constant 0 : index
    %c0_2 = arith.constant 0 : index
    %2 = vector.load %arg2[%c0_1, %c0_2] : memref<16x256xbf16, #tpu.memory_space<vmem>>, vector<16x256xbf16>
    %cst = arith.constant dense<0.000000e+00> : vector<8x256xf32>
    %3 = tpu.matmul %1, %2, %cst {dimension_numbers = #tpu.dot_dimension_numbers<[1], [0], [0], [1], [0, 0, 1, 1], [], []>} : vector<8x16xbf16>, vector<16x256xbf16>, vector<8x256xf32> -> vector<8x256xf32>
    %c0_3 = arith.constant 0 : index
    %c0_4 = arith.constant 0 : index
    %4 = vector.load %arg3[%c0_3, %c0_4] : memref<1x256xf32, #tpu.memory_space<vmem>>, vector<1x256xf32>
    %5 = vector.broadcast %4 : vector<1x256xf32> to vector<8x256xf32>
    %6 = arith.addf %3, %5 : vector<8x256xf32>
    %cst_5 = arith.constant 0.000000e+00 : f32
    %7 = vector.broadcast %cst_5 : f32 to vector<8x256xf32>
    %8 = arith.maximumf %6, %7 : vector<8x256xf32>
    %9 = arith.truncf %8 : vector<8x256xf32> to vector<8x256xbf16>
    %c0_6 = arith.constant 0 : index
    %c0_7 = arith.constant 0 : index
    %10 = vector.load %arg4[%c0_6, %c0_7] : memref<256x256xbf16, #tpu.memory_space<vmem>>, vector<256x256xbf16>
    %cst_8 = arith.constant dense<0.000000e+00> : vector<8x256xf32>
    %11 = tpu.matmul %9, %10, %cst_8 {dimension_numbers = #tpu.dot_dimension_numbers<[1], [0], [0], [1], [0, 0, 1, 1], [], []>} : vector<8x256xbf16>, vector<256x256xbf16>, vector<8x256xf32> -> vector<8x256xf32>
    %c0_9 = arith.constant 0 : index
    %c0_10 = arith.constant 0 : index
    %12 = vector.load %arg5[%c0_9, %c0_10] : memref<1x256xf32, #tpu.memory_space<vmem>>, vector<1x256xf32>
    %13 = vector.broadcast %12 : vector<1x256xf32> to vector<8x256xf32>
    %14 = arith.addf %11, %13 : vector<8x256xf32>
    %cst_11 = arith.constant 0.000000e+00 : f32
    %15 = vector.broadcast %cst_11 : f32 to vector<8x256xf32>
    %16 = arith.maximumf %14, %15 : vector<8x256xf32>
    %17 = arith.truncf %16 : vector<8x256xf32> to vector<8x256xbf16>
    %c0_12 = arith.constant 0 : index
    %c0_13 = arith.constant 0 : index
    %18 = vector.load %arg6[%c0_12, %c0_13] : memref<256x8xbf16, #tpu.memory_space<vmem>>, vector<256x8xbf16>
    %cst_14 = arith.constant dense<0.000000e+00> : vector<8x8xf32>
    %19 = tpu.matmul %17, %18, %cst_14 {dimension_numbers = #tpu.dot_dimension_numbers<[1], [0], [0], [1], [0, 0, 1, 1], [], []>} : vector<8x256xbf16>, vector<256x8xbf16>, vector<8x8xf32> -> vector<8x8xf32>
    %c0_15 = arith.constant 0 : index
    %c0_16 = arith.constant 0 : index
    %20 = vector.load %arg7[%c0_15, %c0_16] : memref<1x8xf32, #tpu.memory_space<vmem>>, vector<1x8xf32>
    %21 = vector.broadcast %20 : vector<1x8xf32> to vector<8x8xf32>
    %22 = arith.addf %19, %21 : vector<8x8xf32>
    %c0_17 = arith.constant 0 : index
    %c0_18 = arith.constant 0 : index
    %23 = vector.load %arg8[%c0_17, %c0_18] : memref<256x8xbf16, #tpu.memory_space<vmem>>, vector<256x8xbf16>
    %cst_19 = arith.constant dense<0.000000e+00> : vector<8x8xf32>
    %24 = tpu.matmul %17, %23, %cst_19 {dimension_numbers = #tpu.dot_dimension_numbers<[1], [0], [0], [1], [0, 0, 1, 1], [], []>} : vector<8x256xbf16>, vector<256x8xbf16>, vector<8x8xf32> -> vector<8x8xf32>
    %c0_20 = arith.constant 0 : index
    %c0_21 = arith.constant 0 : index
    %25 = vector.load %arg9[%c0_20, %c0_21] : memref<1x8xf32, #tpu.memory_space<vmem>>, vector<1x8xf32>
    %26 = vector.broadcast %25 : vector<1x8xf32> to vector<8x8xf32>
    %27 = arith.addf %24, %26 : vector<8x8xf32>
    %c0_22 = arith.constant 0 : index
    %c0_23 = arith.constant 0 : index
    %28 = vector.load %arg10[%c0_22, %c0_23] : memref<8x8xf32, #tpu.memory_space<vmem>>, vector<8x8xf32>
    tpu.vector_store %arg10[%c0_22, %c0_23], %22 {strides = array<i32>} : memref<8x8xf32, #tpu.memory_space<vmem>>, vector<8x8xf32>,
    %cst_24 = arith.constant -2.000000e+01 : f32
    %cst_25 = arith.constant 2.000000e+00 : f32
    %29 = vector.broadcast %cst_24 : f32 to vector<8x8xf32>
    %30 = arith.maximumf %29, %27 : vector<8x8xf32>
    %31 = vector.broadcast %cst_25 : f32 to vector<8x8xf32>
    %32 = arith.minimumf %31, %30 : vector<8x8xf32>
    %c0_26 = arith.constant 0 : index
    %c0_27 = arith.constant 0 : index
    %33 = vector.load %arg11[%c0_26, %c0_27] : memref<8x8xf32, #tpu.memory_space<vmem>>, vector<8x8xf32>
    tpu.vector_store %arg11[%c0_26, %c0_27], %32 {strides = array<i32>} : memref<8x8xf32, #tpu.memory_space<vmem>>, vector<8x8xf32>,
    return
  }
  func.func @transform_0(%arg0: i32) -> (i32, i32) {
    %c0_i32 = arith.constant 0 : i32
    %c0_i32_0 = arith.constant 0 : i32
    return %arg0, %c0_i32 : i32, i32
  }
  func.func @transform_1(%arg0: i32) -> (i32, i32) {
    %c0_i32 = arith.constant 0 : i32
    %c0_i32_0 = arith.constant 0 : i32
    %c0_i32_1 = arith.constant 0 : i32
    return %c0_i32, %c0_i32_0 : i32, i32
  }
  func.func @transform_2(%arg0: i32) -> (i32, i32) {
    %c0_i32 = arith.constant 0 : i32
    %c0_i32_0 = arith.constant 0 : i32
    %c0_i32_1 = arith.constant 0 : i32
    return %c0_i32, %c0_i32_0 : i32, i32
  }
  func.func @transform_3(%arg0: i32) -> (i32, i32) {
    %c0_i32 = arith.constant 0 : i32
    %c0_i32_0 = arith.constant 0 : i32
    %c0_i32_1 = arith.constant 0 : i32
    return %c0_i32, %c0_i32_0 : i32, i32
  }
  func.func @transform_4(%arg0: i32) -> (i32, i32) {
    %c0_i32 = arith.constant 0 : i32
    %c0_i32_0 = arith.constant 0 : i32
    %c0_i32_1 = arith.constant 0 : i32
    return %c0_i32, %c0_i32_0 : i32, i32
  }
  func.func @transform_5(%arg0: i32) -> (i32, i32) {
    %c0_i32 = arith.constant 0 : i32
    %c0_i32_0 = arith.constant 0 : i32
    %c0_i32_1 = arith.constant 0 : i32
    return %c0_i32, %c0_i32_0 : i32, i32
  }
  func.func @transform_6(%arg0: i32) -> (i32, i32) {
    %c0_i32 = arith.constant 0 : i32
    %c0_i32_0 = arith.constant 0 : i32
    %c0_i32_1 = arith.constant 0 : i32
    return %c0_i32, %c0_i32_0 : i32, i32
  }
  func.func @transform_7(%arg0: i32) -> (i32, i32) {
    %c0_i32 = arith.constant 0 : i32
    %c0_i32_0 = arith.constant 0 : i32
    %c0_i32_1 = arith.constant 0 : i32
    return %c0_i32, %c0_i32_0 : i32, i32
  }
  func.func @transform_8(%arg0: i32) -> (i32, i32) {
    %c0_i32 = arith.constant 0 : i32
    %c0_i32_0 = arith.constant 0 : i32
    %c0_i32_1 = arith.constant 0 : i32
    return %c0_i32, %c0_i32_0 : i32, i32
  }
  func.func @transform_9(%arg0: i32) -> (i32, i32) {
    %c0_i32 = arith.constant 0 : i32
    %c0_i32_0 = arith.constant 0 : i32
    return %arg0, %c0_i32 : i32, i32
  }
  func.func @transform_10(%arg0: i32) -> (i32, i32) {
    %c0_i32 = arith.constant 0 : i32
    %c0_i32_0 = arith.constant 0 : i32
    return %arg0, %c0_i32 : i32, i32
  }
}

</mosaic_0001>

<llo_original>
// kernel: tpu_custom_call.1
$region0: #{tpu_custom_call.1}
  #allocation0 [shape = 'u32[]', space=smem, size = 0x4, offset = 0x4, fixed_abs, tag = 'smem constant byte address 0x4 - core index']
  #allocation1 [shape = 'u32[144,128]{1,0:T(1,128)}', space=vmem, size = 0x12000, scoped, tag = 'internal scratch']
  %s0 = inlined_call_operand.vmem [shape: f32[8,16], index: 0, kind: input, shape index: {}]
  %s1 = inlined_call_operand.vmem [shape: bf16[16,256], index: 1, kind: input, shape index: {}]
  %s2 = inlined_call_operand.vmem [shape: f32[1,256], index: 2, kind: input, shape index: {}]
  %s3 = inlined_call_operand.vmem [shape: bf16[256,256], index: 3, kind: input, shape index: {}]
  %s4 = inlined_call_operand.hbm [shape: f32[1,256], index: 4, kind: input, shape index: {}]
  %s5 = inlined_call_operand.vmem [shape: bf16[256,8], index: 5, kind: input, shape index: {}]
  %s6 = inlined_call_operand.hbm [shape: f32[1,8], index: 6, kind: input, shape index: {}]
  %s7 = inlined_call_operand.vmem [shape: bf16[256,8], index: 7, kind: input, shape index: {}]
  %s8 = inlined_call_operand.vmem [shape: f32[1,8], index: 8, kind: input, shape index: {}]
  %s9 = inlined_call_operand.hbm [shape: f32[8,8], index: 9, kind: output, shape index: {0}]
  %s10 = inlined_call_operand.hbm [shape: f32[8,8], index: 10, kind: output, shape index: {1}]
  %11 = xla_tuple %s9, %s10
  %s12 = sld [smem:[#allocation0]]
  $region62: #{tpu_custom_call.1} parent=0
    _
  %s14 = ssub.s32 1, %s12
  %s15 = scalar_select 0, %s14, %s12
  $region1: #{tpu_custom_call.1} parent=0
    #allocation2 [shape = 'u8[1024]{0}', space=vmem, size = 0x400, scoped, tag = 'input window, operand 4, single buffered']
    #allocation3 [shape = 's32[1]{0}', space=sflag, size = 0x4, scoped, tag = 'scoped memory for tpu_custom_call.1']
    #allocation4 [shape = 's32[1]{0}', space=sflag, size = 0x4, scoped, tag = 'scoped memory for tpu_custom_call.1']
    #allocation5 [shape = 'u8[512]{0}', space=vmem, size = 0x400, scoped, tag = 'input window, operand 6, single buffered']
    #allocation6 [shape = 's32[1]{0}', space=sflag, size = 0x4, scoped, tag = 'scoped memory for tpu_custom_call.1']
    #allocation7 [shape = 'u8[4096]{0}', space=vmem, size = 0x1000, scoped, tag = 'output window, operand 0, single buffered']
    #allocation8 [shape = 'u8[4096]{0}', space=vmem, size = 0x1000, scoped, tag = 'output window, operand 1, single buffered']
    #allocation9 [shape = 's32[1]{0}', space=sflag, size = 0x4, scoped, tag = 'scoped memory for tpu_custom_call.1']
    %16 = vsyncpa [#allocation3], 0
    %17 = vsyncpa [#allocation6], 0
    %18 = vsyncpa [#allocation4], 0
    %19 = vsyncpa [#allocation9], 0
    // Predicated region
    $region2: #{tpu_custom_call.1} parent=1 // pred_check
      _
    $region3: #{tpu_custom_call.1} parent=1 // pred_check_branch
      %21 = sbr.rel (0) target = $region5
    $region4: #{tpu_custom_call.1} parent=1 // pred_region
      _
    $region5: #{tpu_custom_call.1} parent=1 // pred_fallthru
      _
    // Predicated region
    $region6: #{tpu_custom_call.1} parent=1 // pred_check
      _
    $region7: #{tpu_custom_call.1} parent=1 // pred_check_branch
      %23 = sbr.rel (0) target = $region9
    $region8: #{tpu_custom_call.1} parent=1 // pred_region
      _
    $region9: #{tpu_custom_call.1} parent=1 // pred_fallthru
      _
    // Predicated region
    $region10: #{tpu_custom_call.1} parent=1 // pred_check
      _
    $region11: #{tpu_custom_call.1} parent=1 // pred_check_branch
      %25 = sbr.rel (0) target = $region13
    $region12: #{tpu_custom_call.1} parent=1 // pred_region
      _
    $region13: #{tpu_custom_call.1} parent=1 // pred_fallthru
      _
    // Predicated region
    $region14: #{tpu_custom_call.1} parent=1 // pred_check
      _
    $region15: #{tpu_custom_call.1} parent=1 // pred_check_branch
      %27 = sbr.rel (0) target = $region17
    $region16: #{tpu_custom_call.1} parent=1 // pred_region
      _
    $region17: #{tpu_custom_call.1} parent=1 // pred_fallthru
      _
    // Predicated region
    $region18: #{tpu_custom_call.1} parent=1 // pred_check
      _
    $region19: #{tpu_custom_call.1} parent=1 // pred_check_branch
      %29 = sbr.rel (0) target = $region21
    $region20: #{tpu_custom_call.1} parent=1 // pred_region
      %s31 = ssub.s32 32, 32
      %32 = vsyncadd [#allocation3], %s31
      %s34 = sshll.u32 [#allocation2], 4
      %s35 = int_to_ptr.vmem [resolvable:$true] %s34
      %37 = dma.hbm_to_vmem [thread:$0]  %s4, 32, %s35, [#allocation3]
    $region21: #{tpu_custom_call.1} parent=1 // pred_fallthru
      _
    // Predicated region
    $region22: #{tpu_custom_call.1} parent=1 // pred_check
      _
    $region23: #{tpu_custom_call.1} parent=1 // pred_check_branch
      %39 = sbr.rel (0) target = $region25
    $region24: #{tpu_custom_call.1} parent=1 // pred_region
      _
    $region25: #{tpu_custom_call.1} parent=1 // pred_fallthru
      _
    // Predicated region
    $region26: #{tpu_custom_call.1} parent=1 // pred_check
      _
    $region27: #{tpu_custom_call.1} parent=1 // pred_check_branch
      %41 = sbr.rel (0) target = $region29
    $region28: #{tpu_custom_call.1} parent=1 // pred_region
      %s43 = ssub.s32 16, 16
      %44 = vsyncadd [#allocation6], %s43
      %s46 = sshll.u32 [#allocation5], 4
      %s47 = int_to_ptr.vmem [resolvable:$true] %s46
      %49 = dma.hbm_to_vmem [thread:$0]  %s6, 16, %s47, [#allocation6]
    $region29: #{tpu_custom_call.1} parent=1 // pred_fallthru
      _
    // Predicated region
    $region30: #{tpu_custom_call.1} parent=1 // pred_check
      _
    $region31: #{tpu_custom_call.1} parent=1 // pred_check_branch
      %51 = sbr.rel (0) target = $region33
    $region32: #{tpu_custom_call.1} parent=1 // pred_region
      _
    $region33: #{tpu_custom_call.1} parent=1 // pred_fallthru
      _
    // Predicated region
    $region34: #{tpu_custom_call.1} parent=1 // pred_check
      _
    $region35: #{tpu_custom_call.1} parent=1 // pred_check_branch
      %53 = sbr.rel (0) target = $region37
    $region36: #{tpu_custom_call.1} parent=1 // pred_region
      _
    $region37: #{tpu_custom_call.1} parent=1 // pred_fallthru
      _
    // Predicated region
    $region38: #{tpu_custom_call.1} parent=1 // pred_check
      _
    $region39: #{tpu_custom_call.1} parent=1 // pred_check_branch
      %55 = sbr.rel (0) target = $region41
    $region40: #{tpu_custom_call.1} parent=1 // pred_region
      %56 = dma.done [#allocation3], 32
    $region41: #{tpu_custom_call.1} parent=1 // pred_fallthru
      _
    // Predicated region
    $region42: #{tpu_custom_call.1} parent=1 // pred_check
      _
    $region43: #{tpu_custom_call.1} parent=1 // pred_check_branch
      %58 = sbr.rel (0) target = $region45
    $region44: #{tpu_custom_call.1} parent=1 // pred_region
      %59 = dma.done [#allocation6], 16
    $region45: #{tpu_custom_call.1} parent=1 // pred_fallthru
      _
    %v61 = vld [vmem:[%s0] sm:$0xff]
    %v62 = vpack.c.bf16 %v61, %v61
    %v63 = vld [vmem:[%s1] sm:$0xff]
    %v64 = vld [vmem:[%s1 + $0x8] sm:$0xff]
    %v65 = vld [vmem:[%s2] sm:$0x3]
    %v67 = vlaneseq
    %v68 = vshrl.u32 %v67, 7
    %v69 = vsub.s32 0, %v68
    %v70 = vrot.slane %v65, %v69
    %v71 = vlaneseq
    %v72 = vshrl.u32 %v71, 7
    %v73 = vsub.s32 1, %v72
    %v74 = vrot.slane %v65, %v73
    %v79 = vunpack.c.l.b16 %v63
    %v80 = vunpack.c.h.b16 %v63
    %v81 = vunpack.c.l.b16 %v64
    %v82 = vunpack.c.h.b16 %v64
    %v83 = vpack.c.b16 %v81, %v79
    %v84 = vpack.c.b16 %v82, %v80
    %vm87 = vcmask 130048
    %v89 = vsel %vm87, %v62, 0
    %91 = vmatprep.subr.bf16.mxu0 %v84
    %92 = vmatpush1.bf16.msra.mxu0 %v83
    %93 = vmatprep.subr.bf16.mxu0 0
    %94 = vmatpush1.bf16.msra.mxu0 0
    %95 = vmatprep.subr.bf16.mxu0 0
    %96 = vmatpush1.bf16.msra.mxu0 0
    %97 = vmatprep.subr.bf16.mxu0 0
    %98 = vmatpush1.bf16.msra.mxu0 0
    %99 = vmatprep.subr.bf16.mxu0 0
    %100 = vmatpush1.bf16.msra.mxu0 0
    %101 = vmatprep.subr.bf16.mxu0 0
    %102 = vmatpush1.bf16.msra.mxu0 0
    %103 = vmatprep.subr.bf16.mxu0 0
    %104 = vmatpush1.bf16.msra.mxu0 0
    %105 = vmatprep.subr.bf16.mxu0 0
    %106 = vmatpush1.bf16.msra.mxu0 0
    %107 = vmatprep.subr.bf16.mxu0 0
    %108 = vmatpush1.bf16.msra.mxu0 0
    %109 = vmatprep.subr.bf16.mxu0 0
    %110 = vmatpush1.bf16.msra.mxu0 0
    %111 = vmatprep.subr.bf16.mxu0 0
    %112 = vmatpush1.bf16.msra.mxu0 0
    %113 = vmatprep.subr.bf16.mxu0 0
    %114 = vmatpush1.bf16.msra.mxu0 0
    %115 = vmatprep.subr.bf16.mxu0 0
    %116 = vmatpush1.bf16.msra.mxu0 0
    %117 = vmatprep.subr.bf16.mxu0 0
    %118 = vmatpush1.bf16.msra.mxu0 0
    %119 = vmatprep.subr.bf16.mxu0 0
    %120 = vmatpush1.bf16.msra.mxu0 0
    %121 = vmatprep.subr.bf16.mxu0 0
    %122 = vmatpush1.bf16.msra.mxu0 0
    %123 = vmatprep.mubr.bf16.mxu0 0
    %124 = vmatmul.mubr.bf16.gmra.mrb[0].mxu0 %v89
    %v125 = vpop.f32.mrb[0].mxu0
    %v126 = vadd.f32 %v70, %v125
    %v127 = vpop.f32.mrb[0].mxu0
    %v128 = vadd.f32 %v74, %v127
    %v129 = vpop.f32.mrb[0].mxu0
    %v130 = vpop.f32.mrb[0].mxu0
    %131 = vdwg.mxu0
    %v132 = vmax.f32 %v126, 0.0
    %v133 = vmax.f32 %v128, 0.0
    %v134 = vpack.c.bf16 %v132, %v132
    %v135 = vpack.c.bf16 %v133, %v133
    %v136 = vld [vmem:[%s3] sm:$0xff]
    %v137 = vld [vmem:[%s3 + $0x8] sm:$0xff]
    %v138 = vld [vmem:[%s3 + $0x10] sm:$0xff]
    %v139 = vld [vmem:[%s3 + $0x18] sm:$0xff]
    %v140 = vld [vmem:[%s3 + $0x20] sm:$0xff]
    %v141 = vld [vmem:[%s3 + $0x28] sm:$0xff]
    %v142 = vld [vmem:[%s3 + $0x30] sm:$0xff]
    %v143 = vld [vmem:[%s3 + $0x38] sm:$0xff]
    %v144 = vld [vmem:[%s3 + $0x40] sm:$0xff]
    %v145 = vld [vmem:[%s3 + $0x48] sm:$0xff]
    %v146 = vld [vmem:[%s3 + $0x50] sm:$0xff]
    %v147 = vld [vmem:[%s3 + $0x58] sm:$0xff]
    %v148 = vld [vmem:[%s3 + $0x60] sm:$0xff]
    %v149 = vld [vmem:[%s3 + $0x68] sm:$0xff]
    %v150 = vld [vmem:[%s3 + $0x70] sm:$0xff]
    %v151 = vld [vmem:[%s3 + $0x78] sm:$0xff]
    %v152 = vld [vmem:[%s3 + $0x80] sm:$0xff]
    %v153 = vld [vmem:[%s3 + $0x88] sm:$0xff]
    %v154 = vld [vmem:[%s3 + $0x90] sm:$0xff]
    %v155 = vld [vmem:[%s3 + $0x98] sm:$0xff]
    %v156 = vld [vmem:[%s3 + $0xa0] sm:$0xff]
    %v157 = vld [vmem:[%s3 + $0xa8] sm:$0xff]
    %v158 = vld [vmem:[%s3 + $0xb0] sm:$0xff]
    %v159 = vld [vmem:[%s3 + $0xb8] sm:$0xff]
    %v160 = vld [vmem:[%s3 + $0xc0] sm:$0xff]
    %v161 = vld [vmem:[%s3 + $0xc8] sm:$0xff]
    %v162 = vld [vmem:[%s3 + $0xd0] sm:$0xff]
    %v163 = vld [vmem:[%s3 + $0xd8] sm:$0xff]
    %v164 = vld [vmem:[%s3 + $0xe0] sm:$0xff]
    %v165 = vld [vmem:[%s3 + $0xe8] sm:$0xff]
    %v166 = vld [vmem:[%s3 + $0xf0] sm:$0xff]
    %v167 = vld [vmem:[%s3 + $0xf8] sm:$0xff]
    %v168 = vld [vmem:[#allocation2] sm:$0x3]
    %v170 = vlaneseq
    %v171 = vshrl.u32 %v170, 7
    %v172 = vsub.s32 0, %v171
    %v173 = vrot.slane %v168, %v172
    %v174 = vlaneseq
    %v175 = vshrl.u32 %v174, 7
    %v176 = vsub.s32 1, %v175
    %v177 = vrot.slane %v168, %v176
    %v212 = vunpack.c.l.b16 %v136
    %v213 = vunpack.c.h.b16 %v136
    %v214 = vunpack.c.l.b16 %v137
    %v215 = vunpack.c.h.b16 %v137
    %v216 = vunpack.c.l.b16 %v138
    %v217 = vunpack.c.h.b16 %v138
    %v218 = vunpack.c.l.b16 %v139
    %v219 = vunpack.c.h.b16 %v139
    %v220 = vunpack.c.l.b16 %v140
    %v221 = vunpack.c.h.b16 %v140
    %v222 = vunpack.c.l.b16 %v141
    %v223 = vunpack.c.h.b16 %v141
    %v224 = vunpack.c.l.b16 %v142
    %v225 = vunpack.c.h.b16 %v142
    %v226 = vunpack.c.l.b16 %v143
    %v227 = vunpack.c.h.b16 %v143
    %v228 = vunpack.c.l.b16 %v144
    %v229 = vunpack.c.h.b16 %v144
    %v230 = vunpack.c.l.b16 %v145
    %v231 = vunpack.c.h.b16 %v145
    %v232 = vunpack.c.l.b16 %v146
    %v233 = vunpack.c.h.b16 %v146
    %v234 = vunpack.c.l.b16 %v147
    %v235 = vunpack.c.h.b16 %v147
    %v236 = vunpack.c.l.b16 %v148
    %v237 = vunpack.c.h.b16 %v148
    %v238 = vunpack.c.l.b16 %v149
    %v239 = vunpack.c.h.b16 %v149
    %v240 = vunpack.c.l.b16 %v150
    %v241 = vunpack.c.h.b16 %v150
    %v242 = vunpack.c.l.b16 %v151
    %v243 = vunpack.c.h.b16 %v151
    %v244 = vunpack.c.l.b16 %v152
    %v245 = vunpack.c.h.b16 %v152
    %v246 = vunpack.c.l.b16 %v153
    %v247 = vunpack.c.h.b16 %v153
    %v248 = vunpack.c.l.b16 %v154
    %v249 = vunpack.c.h.b16 %v154
    %v250 = vunpack.c.l.b16 %v155
    %v251 = vunpack.c.h.b16 %v155
    %v252 = vunpack.c.l.b16 %v156
    %v253 = vunpack.c.h.b16 %v156
    %v254 = vunpack.c.l.b16 %v157
    %v255 = vunpack.c.h.b16 %v157
    %v256 = vunpack.c.l.b16 %v158
    %v257 = vunpack.c.h.b16 %v158
    %v258 = vunpack.c.l.b16 %v159
    %v259 = vunpack.c.h.b16 %v159
    %v260 = vunpack.c.l.b16 %v160
    %v261 = vunpack.c.h.b16 %v160
    %v262 = vunpack.c.l.b16 %v161
    %v263 = vunpack.c.h.b16 %v161
    %v264 = vunpack.c.l.b16 %v162
    %v265 = vunpack.c.h.b16 %v162
    %v266 = vunpack.c.l.b16 %v163
    %v267 = vunpack.c.h.b16 %v163
    %v268 = vunpack.c.l.b16 %v164
    %v269 = vunpack.c.h.b16 %v164
    %v270 = vunpack.c.l.b16 %v165
    %v271 = vunpack.c.h.b16 %v165
    %v272 = vunpack.c.l.b16 %v166
    %v273 = vunpack.c.h.b16 %v166
    %v274 = vunpack.c.l.b16 %v167
    %v275 = vunpack.c.h.b16 %v167
    %v276 = vpack.c.b16 %v214, %v212
    %v277 = vpack.c.b16 %v215, %v213
    %v278 = vpack.c.b16 %v218, %v216
    %v279 = vpack.c.b16 %v219, %v217
    %v280 = vpack.c.b16 %v222, %v220
    %v281 = vpack.c.b16 %v223, %v221
    %v282 = vpack.c.b16 %v226, %v224
    %v283 = vpack.c.b16 %v227, %v225
    %v284 = vpack.c.b16 %v230, %v228
    %v285 = vpack.c.b16 %v231, %v229
    %v286 = vpack.c.b16 %v234, %v232
    %v287 = vpack.c.b16 %v235, %v233
    %v288 = vpack.c.b16 %v238, %v236
    %v289 = vpack.c.b16 %v239, %v237
    %v290 = vpack.c.b16 %v242, %v240
    %v291 = vpack.c.b16 %v243, %v241
    %v292 = vpack.c.b16 %v246, %v244
    %v293 = vpack.c.b16 %v247, %v245
    %v294 = vpack.c.b16 %v250, %v248
    %v295 = vpack.c.b16 %v251, %v249
    %v296 = vpack.c.b16 %v254, %v252
    %v297 = vpack.c.b16 %v255, %v253
    %v298 = vpack.c.b16 %v258, %v256
    %v299 = vpack.c.b16 %v259, %v257
    %v300 = vpack.c.b16 %v262, %v260
    %v301 = vpack.c.b16 %v263, %v261
    %v302 = vpack.c.b16 %v266, %v264
    %v303 = vpack.c.b16 %v267, %v265
    %v304 = vpack.c.b16 %v270, %v268
    %v305 = vpack.c.b16 %v271, %v269
    %v306 = vpack.c.b16 %v274, %v272
    %v307 = vpack.c.b16 %v275, %v273
    %340 = vmatprep.subr.bf16.mxu0 %v277
    %341 = vmatpush1.bf16.msra.mxu0 %v276
    %342 = vmatprep.subr.bf16.mxu0 %v279
    %343 = vmatpush1.bf16.msra.mxu0 %v278
    %344 = vmatprep.subr.bf16.mxu0 %v281
    %345 = vmatpush1.bf16.msra.mxu0 %v280
    %346 = vmatprep.subr.bf16.mxu0 %v283
    %347 = vmatpush1.bf16.msra.mxu0 %v282
    %348 = vmatprep.subr.bf16.mxu0 %v285
    %349 = vmatpush1.bf16.msra.mxu0 %v284
    %350 = vmatprep.subr.bf16.mxu0 %v287
    %351 = vmatpush1.bf16.msra.mxu0 %v286
    %352 = vmatprep.subr.bf16.mxu0 %v289
    %353 = vmatpush1.bf16.msra.mxu0 %v288
    %354 = vmatprep.subr.bf16.mxu0 %v291
    %355 = vmatpush1.bf16.msra.mxu0 %v290
    %356 = vmatprep.subr.bf16.mxu0 %v293
    %357 = vmatpush1.bf16.msra.mxu0 %v292
    %358 = vmatprep.subr.bf16.mxu0 %v295
    %359 = vmatpush1.bf16.msra.mxu0 %v294
    %360 = vmatprep.subr.bf16.mxu0 %v297
    %361 = vmatpush1.bf16.msra.mxu0 %v296
    %362 = vmatprep.subr.bf16.mxu0 %v299
    %363 = vmatpush1.bf16.msra.mxu0 %v298
    %364 = vmatprep.subr.bf16.mxu0 %v301
    %365 = vmatpush1.bf16.msra.mxu0 %v300
    %366 = vmatprep.subr.bf16.mxu0 %v303
    %367 = vmatpush1.bf16.msra.mxu0 %v302
    %368 = vmatprep.subr.bf16.mxu0 %v305
    %369 = vmatpush1.bf16.msra.mxu0 %v304
    %370 = vmatprep.subr.bf16.mxu0 %v307
    %371 = vmatpush1.bf16.msra.mxu0 %v306
    %372 = vmatprep.mubr.bf16.mxu0 %v135
    %373 = vmatmul.mubr.bf16.gmra.mrb[0].mxu0 %v134
    %v374 = vpop.f32.mrb[0].mxu0
    %v375 = vadd.f32 %v173, %v374
    %v376 = vpop.f32.mrb[0].mxu0
    %v377 = vadd.f32 %v177, %v376
    %v378 = vpop.f32.mrb[0].mxu0
    %v379 = vpop.f32.mrb[0].mxu0
    %380 = vdwg.mxu0
    %v381 = vmax.f32 %v375, 0.0
    %v382 = vmax.f32 %v377, 0.0
    %v383 = vpack.c.bf16 %v381, %v381
    %v384 = vpack.c.bf16 %v382, %v382
    %v385 = vld [vmem:[%s5] sm:$0xf]
    %v386 = vld [vmem:[%s5 + $0x4] sm:$0xf]
    %v387 = vld [vmem:[%s5 + $0x8] sm:$0xf]
    %v388 = vld [vmem:[%s5 + $0xc] sm:$0xf]
    %v389 = vld [vmem:[%s5 + $0x10] sm:$0xf]
    %v390 = vld [vmem:[%s5 + $0x14] sm:$0xf]
    %v391 = vld [vmem:[%s5 + $0x18] sm:$0xf]
    %v392 = vld [vmem:[%s5 + $0x1c] sm:$0xf]
    %v393 = vld [vmem:[%s5 + $0x20] sm:$0xf]
    %v394 = vld [vmem:[%s5 + $0x24] sm:$0xf]
    %v395 = vld [vmem:[%s5 + $0x28] sm:$0xf]
    %v396 = vld [vmem:[%s5 + $0x2c] sm:$0xf]
    %v397 = vld [vmem:[%s5 + $0x30] sm:$0xf]
    %v398 = vld [vmem:[%s5 + $0x34] sm:$0xf]
    %v399 = vld [vmem:[%s5 + $0x38] sm:$0xf]
    %v400 = vld [vmem:[%s5 + $0x3c] sm:$0xf]
    %v401 = vld [vmem:[%s5 + $0x40] sm:$0xf]
    %v402 = vld [vmem:[%s5 + $0x44] sm:$0xf]
    %v403 = vld [vmem:[%s5 + $0x48] sm:$0xf]
    %v404 = vld [vmem:[%s5 + $0x4c] sm:$0xf]
    %v405 = vld [vmem:[%s5 + $0x50] sm:$0xf]
    %v406 = vld [vmem:[%s5 + $0x54] sm:$0xf]
    %v407 = vld [vmem:[%s5 + $0x58] sm:$0xf]
    %v408 = vld [vmem:[%s5 + $0x5c] sm:$0xf]
    %v409 = vld [vmem:[%s5 + $0x60] sm:$0xf]
    %v410 = vld [vmem:[%s5 + $0x64] sm:$0xf]
    %v411 = vld [vmem:[%s5 + $0x68] sm:$0xf]
    %v412 = vld [vmem:[%s5 + $0x6c] sm:$0xf]
    %v413 = vld [vmem:[%s5 + $0x70] sm:$0xf]
    %v414 = vld [vmem:[%s5 + $0x74] sm:$0xf]
    %v415 = vld [vmem:[%s5 + $0x78] sm:$0xf]
    %v416 = vld [vmem:[%s5 + $0x7c] sm:$0xf]
    %v417 = vld [vmem:[#allocation5] sm:$0x1]
    %v419 = vlaneseq
    %v420 = vshrl.u32 %v419, 7
    %v421 = vsub.s32 0, %v420
    %v422 = vrot.slane %v417, %v421
    %v456 = vunpack.c.l.b16 %v385
    %v457 = vunpack.c.l.b16 %v386
    %v458 = vunpack.c.l.b16 %v387
    %v459 = vunpack.c.l.b16 %v388
    %v460 = vunpack.c.l.b16 %v389
    %v461 = vunpack.c.l.b16 %v390
    %v462 = vunpack.c.l.b16 %v391
    %v463 = vunpack.c.l.b16 %v392
    %v464 = vunpack.c.l.b16 %v393
    %v465 = vunpack.c.l.b16 %v394
    %v466 = vunpack.c.l.b16 %v395
    %v467 = vunpack.c.l.b16 %v396
    %v468 = vunpack.c.l.b16 %v397
    %v469 = vunpack.c.l.b16 %v398
    %v470 = vunpack.c.l.b16 %v399
    %v471 = vunpack.c.l.b16 %v400
    %v472 = vunpack.c.l.b16 %v401
    %v473 = vunpack.c.l.b16 %v402
    %v474 = vunpack.c.l.b16 %v403
    %v475 = vunpack.c.l.b16 %v404
    %v476 = vunpack.c.l.b16 %v405
    %v477 = vunpack.c.l.b16 %v406
    %v478 = vunpack.c.l.b16 %v407
    %v479 = vunpack.c.l.b16 %v408
    %v480 = vunpack.c.l.b16 %v409
    %v481 = vunpack.c.l.b16 %v410
    %v482 = vunpack.c.l.b16 %v411
    %v483 = vunpack.c.l.b16 %v412
    %v484 = vunpack.c.l.b16 %v413
    %v485 = vunpack.c.l.b16 %v414
    %v486 = vunpack.c.l.b16 %v415
    %v487 = vunpack.c.l.b16 %v416
    %v488 = vpack.c.b16 %v457, %v456
    %v489 = vpack.c.b16 %v459, %v458
    %v490 = vpack.c.b16 %v461, %v460
    %v491 = vpack.c.b16 %v463, %v462
    %v492 = vpack.c.b16 %v465, %v464
    %v493 = vpack.c.b16 %v467, %v466
    %v494 = vpack.c.b16 %v469, %v468
    %v495 = vpack.c.b16 %v471, %v470
    %v496 = vpack.c.b16 %v473, %v472
    %v497 = vpack.c.b16 %v475, %v474
    %v498 = vpack.c.b16 %v477, %v476
    %v499 = vpack.c.b16 %v479, %v478
    %v500 = vpack.c.b16 %v481, %v480
    %v501 = vpack.c.b16 %v483, %v482
    %v502 = vpack.c.b16 %v485, %v484
    %v503 = vpack.c.b16 %v487, %v486
    %520 = vmatprep.subr.bf16.mxu0 0
    %521 = vmatpush1.bf16.msra.mxu0 %v488
    %522 = vmatprep.subr.bf16.mxu0 0
    %523 = vmatpush1.bf16.msra.mxu0 %v489
    %524 = vmatprep.subr.bf16.mxu0 0
    %525 = vmatpush1.bf16.msra.mxu0 %v490
    %526 = vmatprep.subr.bf16.mxu0 0
    %527 = vmatpush1.bf16.msra.mxu0 %v491
    %528 = vmatprep.subr.bf16.mxu0 0
    %529 = vmatpush1.bf16.msra.mxu0 %v492
    %530 = vmatprep.subr.bf16.mxu0 0
    %531 = vmatpush1.bf16.msra.mxu0 %v493
    %532 = vmatprep.subr.bf16.mxu0 0
    %533 = vmatpush1.bf16.msra.mxu0 %v494
    %534 = vmatprep.subr.bf16.mxu0 0
    %535 = vmatpush1.bf16.msra.mxu0 %v495
    %536 = vmatprep.subr.bf16.mxu0 0
    %537 = vmatpush1.bf16.msra.mxu0 %v496
    %538 = vmatprep.subr.bf16.mxu0 0
    %539 = vmatpush1.bf16.msra.mxu0 %v497
    %540 = vmatprep.subr.bf16.mxu0 0
    %541 = vmatpush1.bf16.msra.mxu0 %v498
    %542 = vmatprep.subr.bf16.mxu0 0
    %543 = vmatpush1.bf16.msra.mxu0 %v499
    %544 = vmatprep.subr.bf16.mxu0 0
    %545 = vmatpush1.bf16.msra.mxu0 %v500
    %546 = vmatprep.subr.bf16.mxu0 0
    %547 = vmatpush1.bf16.msra.mxu0 %v501
    %548 = vmatprep.subr.bf16.mxu0 0
    %549 = vmatpush1.bf16.msra.mxu0 %v502
    %550 = vmatprep.subr.bf16.mxu0 0
    %551 = vmatpush1.bf16.msra.mxu0 %v503
    %552 = vmatprep.mubr.bf16.mxu0 %v384
    %553 = vmatmul.mubr.bf16.gmra.mrb[0].mxu0 %v383
    %v554 = vpop.f32.mrb[0].mxu0
    %v555 = vadd.f32 %v422, %v554
    %v556 = vpop.f32.mrb[0].mxu0
    %v557 = vpop.f32.mrb[0].mxu0
    %v558 = vpop.f32.mrb[0].mxu0
    %559 = vdwg.mxu0
    %v560 = vld [vmem:[%s7] sm:$0xf]
    %v561 = vld [vmem:[%s7 + $0x4] sm:$0xf]
    %v562 = vld [vmem:[%s7 + $0x8] sm:$0xf]
    %v563 = vld [vmem:[%s7 + $0xc] sm:$0xf]
    %v564 = vld [vmem:[%s7 + $0x10] sm:$0xf]
    %v565 = vld [vmem:[%s7 + $0x14] sm:$0xf]
    %v566 = vld [vmem:[%s7 + $0x18] sm:$0xf]
    %v567 = vld [vmem:[%s7 + $0x1c] sm:$0xf]
    %v568 = vld [vmem:[%s7 + $0x20] sm:$0xf]
    %v569 = vld [vmem:[%s7 + $0x24] sm:$0xf]
    %v570 = vld [vmem:[%s7 + $0x28] sm:$0xf]
    %v571 = vld [vmem:[%s7 + $0x2c] sm:$0xf]
    %v572 = vld [vmem:[%s7 + $0x30] sm:$0xf]
    %v573 = vld [vmem:[%s7 + $0x34] sm:$0xf]
    %v574 = vld [vmem:[%s7 + $0x38] sm:$0xf]
    %v575 = vld [vmem:[%s7 + $0x3c] sm:$0xf]
    %v576 = vld [vmem:[%s7 + $0x40] sm:$0xf]
    %v577 = vld [vmem:[%s7 + $0x44] sm:$0xf]
    %v578 = vld [vmem:[%s7 + $0x48] sm:$0xf]
    %v579 = vld [vmem:[%s7 + $0x4c] sm:$0xf]
    %v580 = vld [vmem:[%s7 + $0x50] sm:$0xf]
    %v581 = vld [vmem:[%s7 + $0x54] sm:$0xf]
    %v582 = vld [vmem:[%s7 + $0x58] sm:$0xf]
    %v583 = vld [vmem:[%s7 + $0x5c] sm:$0xf]
    %v584 = vld [vmem:[%s7 + $0x60] sm:$0xf]
    %v585 = vld [vmem:[%s7 + $0x64] sm:$0xf]
    %v586 = vld [vmem:[%s7 + $0x68] sm:$0xf]
    %v587 = vld [vmem:[%s7 + $0x6c] sm:$0xf]
    %v588 = vld [vmem:[%s7 + $0x70] sm:$0xf]
    %v589 = vld [vmem:[%s7 + $0x74] sm:$0xf]
    %v590 = vld [vmem:[%s7 + $0x78] sm:$0xf]
    %v591 = vld [vmem:[%s7 + $0x7c] sm:$0xf]
    %v592 = vld [vmem:[%s8] sm:$0x1]
    %v594 = vlaneseq
    %v595 = vshrl.u32 %v594, 7
    %v596 = vsub.s32 0, %v595
    %v597 = vrot.slane %v592, %v596
    %v631 = vunpack.c.l.b16 %v560
    %v632 = vunpack.c.l.b16 %v561
    %v633 = vunpack.c.l.b16 %v562
    %v634 = vunpack.c.l.b16 %v563
    %v635 = vunpack.c.l.b16 %v564
    %v636 = vunpack.c.l.b16 %v565
    %v637 = vunpack.c.l.b16 %v566
    %v638 = vunpack.c.l.b16 %v567
    %v639 = vunpack.c.l.b16 %v568
    %v640 = vunpack.c.l.b16 %v569
    %v641 = vunpack.c.l.b16 %v570
    %v642 = vunpack.c.l.b16 %v571
    %v643 = vunpack.c.l.b16 %v572
    %v644 = vunpack.c.l.b16 %v573
    %v645 = vunpack.c.l.b16 %v574
    %v646 = vunpack.c.l.b16 %v575
    %v647 = vunpack.c.l.b16 %v576
    %v648 = vunpack.c.l.b16 %v577
    %v649 = vunpack.c.l.b16 %v578
    %v650 = vunpack.c.l.b16 %v579
    %v651 = vunpack.c.l.b16 %v580
    %v652 = vunpack.c.l.b16 %v581
    %v653 = vunpack.c.l.b16 %v582
    %v654 = vunpack.c.l.b16 %v583
    %v655 = vunpack.c.l.b16 %v584
    %v656 = vunpack.c.l.b16 %v585
    %v657 = vunpack.c.l.b16 %v586
    %v658 = vunpack.c.l.b16 %v587
    %v659 = vunpack.c.l.b16 %v588
    %v660 = vunpack.c.l.b16 %v589
    %v661 = vunpack.c.l.b16 %v590
    %v662 = vunpack.c.l.b16 %v591
    %v663 = vpack.c.b16 %v632, %v631
    %v664 = vpack.c.b16 %v634, %v633
    %v665 = vpack.c.b16 %v636, %v635
    %v666 = vpack.c.b16 %v638, %v637
    %v667 = vpack.c.b16 %v640, %v639
    %v668 = vpack.c.b16 %v642, %v641
    %v669 = vpack.c.b16 %v644, %v643
    %v670 = vpack.c.b16 %v646, %v645
    %v671 = vpack.c.b16 %v648, %v647
    %v672 = vpack.c.b16 %v650, %v649
    %v673 = vpack.c.b16 %v652, %v651
    %v674 = vpack.c.b16 %v654, %v653
    %v675 = vpack.c.b16 %v656, %v655
    %v676 = vpack.c.b16 %v658, %v657
    %v677 = vpack.c.b16 %v660, %v659
    %v678 = vpack.c.b16 %v662, %v661
    %695 = vmatprep.subr.bf16.mxu0 0
    %696 = vmatpush1.bf16.msra.mxu0 %v663
    %697 = vmatprep.subr.bf16.mxu0 0
    %698 = vmatpush1.bf16.msra.mxu0 %v664
    %699 = vmatprep.subr.bf16.mxu0 0
    %700 = vmatpush1.bf16.msra.mxu0 %v665
    %701 = vmatprep.subr.bf16.mxu0 0
    %702 = vmatpush1.bf16.msra.mxu0 %v666
    %703 = vmatprep.subr.bf16.mxu0 0
    %704 = vmatpush1.bf16.msra.mxu0 %v667
    %705 = vmatprep.subr.bf16.mxu0 0
    %706 = vmatpush1.bf16.msra.mxu0 %v668
    %707 = vmatprep.subr.bf16.mxu0 0
    %708 = vmatpush1.bf16.msra.mxu0 %v669
    %709 = vmatprep.subr.bf16.mxu0 0
    %710 = vmatpush1.bf16.msra.mxu0 %v670
    %711 = vmatprep.subr.bf16.mxu0 0
    %712 = vmatpush1.bf16.msra.mxu0 %v671
    %713 = vmatprep.subr.bf16.mxu0 0
    %714 = vmatpush1.bf16.msra.mxu0 %v672
    %715 = vmatprep.subr.bf16.mxu0 0
    %716 = vmatpush1.bf16.msra.mxu0 %v673
    %717 = vmatprep.subr.bf16.mxu0 0
    %718 = vmatpush1.bf16.msra.mxu0 %v674
    %719 = vmatprep.subr.bf16.mxu0 0
    %720 = vmatpush1.bf16.msra.mxu0 %v675
    %721 = vmatprep.subr.bf16.mxu0 0
    %722 = vmatpush1.bf16.msra.mxu0 %v676
    %723 = vmatprep.subr.bf16.mxu0 0
    %724 = vmatpush1.bf16.msra.mxu0 %v677
    %725 = vmatprep.subr.bf16.mxu0 0
    %726 = vmatpush1.bf16.msra.mxu0 %v678
    %727 = vmatprep.mubr.bf16.mxu0 %v384
    %728 = vmatmul.mubr.bf16.gmra.mrb[0].mxu0 %v383
    %v729 = vpop.f32.mrb[0].mxu0
    %v730 = vadd.f32 %v597, %v729
    %v731 = vpop.f32.mrb[0].mxu0
    %v732 = vpop.f32.mrb[0].mxu0
    %v733 = vpop.f32.mrb[0].mxu0
    %734 = vdwg.mxu0
    %vm735 = vcmask 64512
    %736 = vst.msk [vmem:[#allocation7] sm:$0xff] %vm735, %v555
    %v737 = vmax.f32 %v730, -20.0
    %v738 = vmin.f32 %v737, 2.0
    %739 = vst.msk [vmem:[#allocation8] sm:$0xff] %vm735, %v738
    // Predicated region
    $region46: #{tpu_custom_call.1} parent=1 // pred_check
      _
    $region47: #{tpu_custom_call.1} parent=1 // pred_check_branch
      %741 = sbr.rel (0) target = $region49
    $region48: #{tpu_custom_call.1} parent=1 // pred_region
      %s743 = ssub.s32 128, 128
      %744 = vsyncadd [#allocation4], %s743
      %s746 = sshll.u32 [#allocation7], 4
      %s747 = int_to_ptr.vmem [resolvable:$true] %s746
      %749 = dma.vmem_to_hbm [thread:$0]  %s747, 128, %s9, [#allocation4]
    $region49: #{tpu_custom_call.1} parent=1 // pred_fallthru
      _
    // Predicated region
    $region50: #{tpu_custom_call.1} parent=1 // pred_check
      _
    $region51: #{tpu_custom_call.1} parent=1 // pred_check_branch
      %751 = sbr.rel (0) target = $region53
    $region52: #{tpu_custom_call.1} parent=1 // pred_region
      %s753 = ssub.s32 128, 128
      %754 = vsyncadd [#allocation9], %s753
      %s756 = sshll.u32 [#allocation8], 4
      %s757 = int_to_ptr.vmem [resolvable:$true] %s756
      %759 = dma.vmem_to_hbm [thread:$0]  %s757, 128, %s10, [#allocation9]
    $region53: #{tpu_custom_call.1} parent=1 // pred_fallthru
      _
    // Predicated region
    $region54: #{tpu_custom_call.1} parent=1 // pred_check
      _
    $region55: #{tpu_custom_call.1} parent=1 // pred_check_branch
      %761 = sbr.rel (0) target = $region57
    $region56: #{tpu_custom_call.1} parent=1 // pred_region
      %762 = dma.done [#allocation4], 128
    $region57: #{tpu_custom_call.1} parent=1 // pred_fallthru
      _
    // Predicated region
    $region58: #{tpu_custom_call.1} parent=1 // pred_check
      _
    $region59: #{tpu_custom_call.1} parent=1 // pred_check_branch
      %764 = sbr.rel (0) target = $region61
    $region60: #{tpu_custom_call.1} parent=1 // pred_region
      %765 = dma.done [#allocation9], 128
    $region61: #{tpu_custom_call.1} parent=1 // pred_fallthru
      _
    %766 = vsyncpa [#allocation3], 1
    %767 = vsyncpa [#allocation6], 1
    %768 = vsyncpa [#allocation4], 1
    %769 = vsyncpa [#allocation9], 1

// kernel: tpu_custom_call.1
$region0: #{tpu_custom_call.1}
  #allocation0 [shape = 'u32[]', space=smem, size = 0x4, offset = 0x4, fixed_abs, tag = 'smem constant byte address 0x4 - core index']
  #allocation1 [shape = 'u32[144,128]{1,0:T(1,128)}', space=vmem, size = 0x12000, scoped, tag = 'internal scratch']
  %s0 = inlined_call_operand.vmem [shape: f32[8,16], index: 0, kind: input, shape index: {}]
  %s1 = inlined_call_operand.vmem [shape: bf16[16,256], index: 1, kind: input, shape index: {}]
  %s2 = inlined_call_operand.vmem [shape: f32[1,256], index: 2, kind: input, shape index: {}]
  %s3 = inlined_call_operand.vmem [shape: bf16[256,256], index: 3, kind: input, shape index: {}]
  %s4 = inlined_call_operand.hbm [shape: f32[1,256], index: 4, kind: input, shape index: {}]
  %s5 = inlined_call_operand.vmem [shape: bf16[256,8], index: 5, kind: input, shape index: {}]
  %s6 = inlined_call_operand.hbm [shape: f32[1,8], index: 6, kind: input, shape index: {}]
  %s7 = inlined_call_operand.vmem [shape: bf16[256,8], index: 7, kind: input, shape index: {}]
  %s8 = inlined_call_operand.vmem [shape: f32[1,8], index: 8, kind: input, shape index: {}]
  %s9 = inlined_call_operand.hbm [shape: f32[8,8], index: 9, kind: output, shape index: {0}]
  %s10 = inlined_call_operand.hbm [shape: f32[8,8], index: 10, kind: output, shape index: {1}]
  %11 = xla_tuple %s9, %s10
  %s12 = sld [smem:[#allocation0]]
  $region62: #{tpu_custom_call.1} parent=0
    _
  %s14 = ssub.s32 1, %s12
  %s15 = scalar_select 0, %s14, %s12
  $region1: #{tpu_custom_call.1} parent=0
    #allocation2 [shape = 'u8[1024]{0}', space=vmem, size = 0x400, scoped, tag = 'input window, operand 4, single buffered']
    #allocation3 [shape = 's32[1]{0}', space=sflag, size = 0x4, scoped, tag = 'scoped memory for tpu_custom_call.1']
    #allocation4 [shape = 's32[1]{0}', space=sflag, size = 0x4, scoped, tag = 'scoped memory for tpu_custom_call.1']
    #allocation5 [shape = 'u8[512]{0}', space=vmem, size = 0x400, scoped, tag = 'input window, operand 6, single buffered']
    #allocation6 [shape = 's32[1]{0}', space=sflag, size = 0x4, scoped, tag = 'scoped memory for tpu_custom_call.1']
    #allocation7 [shape = 'u8[4096]{0}', space=vmem, size = 0x1000, scoped, tag = 'output window, operand 0, single buffered']
    #allocation8 [shape = 'u8[4096]{0}', space=vmem, size = 0x1000, scoped, tag = 'output window, operand 1, single buffered']
    #allocation9 [shape = 's32[1]{0}', space=sflag, size = 0x4, scoped, tag = 'scoped memory for tpu_custom_call.1']
    %16 = vsyncpa [#allocation3], 0
    %17 = vsyncpa [#allocation6], 0
    %18 = vsyncpa [#allocation4], 0
    %19 = vsyncpa [#allocation9], 0
    // Predicated region
    $region2: #{tpu_custom_call.1} parent=1 // pred_check
      _
    $region3: #{tpu_custom_call.1} parent=1 // pred_check_branch
      %21 = sbr.rel (0) target = $region5
    $region4: #{tpu_custom_call.1} parent=1 // pred_region
      _
    $region5: #{tpu_custom_call.1} parent=1 // pred_fallthru
      _
    // Predicated region
    $region6: #{tpu_custom_call.1} parent=1 // pred_check
      _
    $region7: #{tpu_custom_call.1} parent=1 // pred_check_branch
      %23 = sbr.rel (0) target = $region9
    $region8: #{tpu_custom_call.1} parent=1 // pred_region
      _
    $region9: #{tpu_custom_call.1} parent=1 // pred_fallthru
      _
    // Predicated region
    $region10: #{tpu_custom_call.1} parent=1 // pred_check
      _
    $region11: #{tpu_custom_call.1} parent=1 // pred_check_branch
      %25 = sbr.rel (0) target = $region13
    $region12: #{tpu_custom_call.1} parent=1 // pred_region
      _
    $region13: #{tpu_custom_call.1} parent=1 // pred_fallthru
      _
    // Predicated region
    $region14: #{tpu_custom_call.1} parent=1 // pred_check
      _
    $region15: #{tpu_custom_call.1} parent=1 // pred_check_branch
      %27 = sbr.rel (0) target = $region17
    $region16: #{tpu_custom_call.1} parent=1 // pred_region
      _
    $region17: #{tpu_custom_call.1} parent=1 // pred_fallthru
      _
    // Predicated region
    $region18: #{tpu_custom_call.1} parent=1 // pred_check
      _
    $region19: #{tpu_custom_call.1} parent=1 // pred_check_branch
      %29 = sbr.rel (0) target = $region21
    $region20: #{tpu_custom_call.1} parent=1 // pred_region
      %s31 = ssub.s32 32, 32
      %32 = vsyncadd [#allocation3], %s31
      %s34 = sshll.u32 [#allocation2], 4
      %s35 = int_to_ptr.vmem [resolvable:$true] %s34
      %37 = dma.hbm_to_vmem [thread:$0]  %s4, 32, %s35, [#allocation3]
    $region21: #{tpu_custom_call.1} parent=1 // pred_fallthru
      _
    // Predicated region
    $region22: #{tpu_custom_call.1} parent=1 // pred_check
      _
    $region23: #{tpu_custom_call.1} parent=1 // pred_check_branch
      %39 = sbr.rel (0) target = $region25
    $region24: #{tpu_custom_call.1} parent=1 // pred_region
      _
    $region25: #{tpu_custom_call.1} parent=1 // pred_fallthru
      _
    // Predicated region
    $region26: #{tpu_custom_call.1} parent=1 // pred_check
      _
    $region27: #{tpu_custom_call.1} parent=1 // pred_check_branch
      %41 = sbr.rel (0) target = $region29
    $region28: #{tpu_custom_call.1} parent=1 // pred_region
      %s43 = ssub.s32 16, 16
      %44 = vsyncadd [#allocation6], %s43
      %s46 = sshll.u32 [#allocation5], 4
      %s47 = int_to_ptr.vmem [resolvable:$true] %s46
      %49 = dma.hbm_to_vmem [thread:$0]  %s6, 16, %s47, [#allocation6]
    $region29: #{tpu_custom_call.1} parent=1 // pred_fallthru
      _
    // Predicated region
    $region30: #{tpu_custom_call.1} parent=1 // pred_check
      _
    $region31: #{tpu_custom_call.1} parent=1 // pred_check_branch
      %51 = sbr.rel (0) target = $region33
    $region32: #{tpu_custom_call.1} parent=1 // pred_region
      _
    $region33: #{tpu_custom_call.1} parent=1 // pred_fallthru
      _
    // Predicated region
    $region34: #{tpu_custom_call.1} parent=1 // pred_check
      _
    $region35: #{tpu_custom_call.1} parent=1 // pred_check_branch
      %53 = sbr.rel (0) target = $region37
    $region36: #{tpu_custom_call.1} parent=1 // pred_region
      _
    $region37: #{tpu_custom_call.1} parent=1 // pred_fallthru
      _
    // Predicated region
    $region38: #{tpu_custom_call.1} parent=1 // pred_check
      _
    $region39: #{tpu_custom_call.1} parent=1 // pred_check_branch
      %55 = sbr.rel (0) target = $region41
    $region40: #{tpu_custom_call.1} parent=1 // pred_region
      %56 = dma.done [#allocation3], 32
    $region41: #{tpu_custom_call.1} parent=1 // pred_fallthru
      _
    // Predicated region
    $region42: #{tpu_custom_call.1} parent=1 // pred_check
      _
    $region43: #{tpu_custom_call.1} parent=1 // pred_check_branch
      %58 = sbr.rel (0) target = $region45
    $region44: #{tpu_custom_call.1} parent=1 // pred_region
      %59 = dma.done [#allocation6], 16
    $region45: #{tpu_custom_call.1} parent=1 // pred_fallthru
      _
    %v61 = vld [vmem:[%s0] sm:$0xff]
    %v62 = vpack.c.bf16 %v61, %v61
    %v63 = vld [vmem:[%s1] sm:$0xff]
    %v64 = vld [vmem:[%s1 + $0x8] sm:$0xff]
    %v65 = vld [vmem:[%s2] sm:$0x3]
    %v67 = vlaneseq
    %v68 = vshrl.u32 %v67, 7
    %v69 = vsub.s32 0, %v68
    %v70 = vrot.slane %v65, %v69
    %v71 = vlaneseq
    %v72 = vshrl.u32 %v71, 7
    %v73 = vsub.s32 1, %v72
    %v74 = vrot.slane %v65, %v73
    %v79 = vunpack.c.l.b16 %v63
    %v80 = vunpack.c.h.b16 %v63
    %v81 = vunpack.c.l.b16 %v64
    %v82 = vunpack.c.h.b16 %v64
    %v83 = vpack.c.b16 %v81, %v79
    %v84 = vpack.c.b16 %v82, %v80
    %vm87 = vcmask 130048
    %v89 = vsel %vm87, %v62, 0
    %91 = vmatprep.subr.bf16.mxu0 %v84
    %92 = vmatpush1.bf16.msra.mxu0 %v83
    %93 = vmatprep.subr.bf16.mxu0 0
    %94 = vmatpush1.bf16.msra.mxu0 0
    %95 = vmatprep.subr.bf16.mxu0 0
    %96 = vmatpush1.bf16.msra.mxu0 0
    %97 = vmatprep.subr.bf16.mxu0 0
    %98 = vmatpush1.bf16.msra.mxu0 0
    %99 = vmatprep.subr.bf16.mxu0 0
    %100 = vmatpush1.bf16.msra.mxu0 0
    %101 = vmatprep.subr.bf16.mxu0 0
    %102 = vmatpush1.bf16.msra.mxu0 0
    %103 = vmatprep.subr.bf16.mxu0 0
    %104 = vmatpush1.bf16.msra.mxu0 0
    %105 = vmatprep.subr.bf16.mxu0 0
    %106 = vmatpush1.bf16.msra.mxu0 0
    %107 = vmatprep.subr.bf16.mxu0 0
    %108 = vmatpush1.bf16.msra.mxu0 0
    %109 = vmatprep.subr.bf16.mxu0 0
    %110 = vmatpush1.bf16.msra.mxu0 0
    %111 = vmatprep.subr.bf16.mxu0 0
    %112 = vmatpush1.bf16.msra.mxu0 0
    %113 = vmatprep.subr.bf16.mxu0 0
    %114 = vmatpush1.bf16.msra.mxu0 0
    %115 = vmatprep.subr.bf16.mxu0 0
    %116 = vmatpush1.bf16.msra.mxu0 0
    %117 = vmatprep.subr.bf16.mxu0 0
    %118 = vmatpush1.bf16.msra.mxu0 0
    %119 = vmatprep.subr.bf16.mxu0 0
    %120 = vmatpush1.bf16.msra.mxu0 0
    %121 = vmatprep.subr.bf16.mxu0 0
    %122 = vmatpush1.bf16.msra.mxu0 0
    %123 = vmatprep.mubr.bf16.mxu0 0
    %124 = vmatmul.mubr.bf16.gmra.mrb[0].mxu0 %v89
    %v125 = vpop.f32.mrb[0].mxu0
    %v126 = vadd.f32 %v70, %v125
    %v127 = vpop.f32.mrb[0].mxu0
    %v128 = vadd.f32 %v74, %v127
    %v129 = vpop.f32.mrb[0].mxu0
    %v130 = vpop.f32.mrb[0].mxu0
    %131 = vdwg.mxu0
    %v132 = vmax.f32 %v126, 0.0
    %v133 = vmax.f32 %v128, 0.0
    %v134 = vpack.c.bf16 %v132, %v132
    %v135 = vpack.c.bf16 %v133, %v133
    %v136 = vld [vmem:[%s3] sm:$0xff]
    %v137 = vld [vmem:[%s3 + $0x8] sm:$0xff]
    %v138 = vld [vmem:[%s3 + $0x10] sm:$0xff]
    %v139 = vld [vmem:[%s3 + $0x18] sm:$0xff]
    %v140 = vld [vmem:[%s3 + $0x20] sm:$0xff]
    %v141 = vld [vmem:[%s3 + $0x28] sm:$0xff]
    %v142 = vld [vmem:[%s3 + $0x30] sm:$0xff]
    %v143 = vld [vmem:[%s3 + $0x38] sm:$0xff]
    %v144 = vld [vmem:[%s3 + $0x40] sm:$0xff]
    %v145 = vld [vmem:[%s3 + $0x48] sm:$0xff]
    %v146 = vld [vmem:[%s3 + $0x50] sm:$0xff]
    %v147 = vld [vmem:[%s3 + $0x58] sm:$0xff]
    %v148 = vld [vmem:[%s3 + $0x60] sm:$0xff]
    %v149 = vld [vmem:[%s3 + $0x68] sm:$0xff]
    %v150 = vld [vmem:[%s3 + $0x70] sm:$0xff]
    %v151 = vld [vmem:[%s3 + $0x78] sm:$0xff]
    %v152 = vld [vmem:[%s3 + $0x80] sm:$0xff]
    %v153 = vld [vmem:[%s3 + $0x88] sm:$0xff]
    %v154 = vld [vmem:[%s3 + $0x90] sm:$0xff]
    %v155 = vld [vmem:[%s3 + $0x98] sm:$0xff]
    %v156 = vld [vmem:[%s3 + $0xa0] sm:$0xff]
    %v157 = vld [vmem:[%s3 + $0xa8] sm:$0xff]
    %v158 = vld [vmem:[%s3 + $0xb0] sm:$0xff]
    %v159 = vld [vmem:[%s3 + $0xb8] sm:$0xff]
    %v160 = vld [vmem:[%s3 + $0xc0] sm:$0xff]
    %v161 = vld [vmem:[%s3 + $0xc8] sm:$0xff]
    %v162 = vld [vmem:[%s3 + $0xd0] sm:$0xff]
    %v163 = vld [vmem:[%s3 + $0xd8] sm:$0xff]
    %v164 = vld [vmem:[%s3 + $0xe0] sm:$0xff]
    %v165 = vld [vmem:[%s3 + $0xe8] sm:$0xff]
    %v166 = vld [vmem:[%s3 + $0xf0] sm:$0xff]
    %v167 = vld [vmem:[%s3 + $0xf8] sm:$0xff]
    %v168 = vld [vmem:[#allocation2] sm:$0x3]
    %v170 = vlaneseq
    %v171 = vshrl.u32 %v170, 7
    %v172 = vsub.s32 0, %v171
    %v173 = vrot.slane %v168, %v172
    %v174 = vlaneseq
    %v175 = vshrl.u32 %v174, 7
    %v176 = vsub.s32 1, %v175
    %v177 = vrot.slane %v168, %v176
    %v212 = vunpack.c.l.b16 %v136
    %v213 = vunpack.c.h.b16 %v136
    %v214 = vunpack.c.l.b16 %v137
    %v215 = vunpack.c.h.b16 %v137
    %v216 = vunpack.c.l.b16 %v138
    %v217 = vunpack.c.h.b16 %v138
    %v218 = vunpack.c.l.b16 %v139
    %v219 = vunpack.c.h.b16 %v139
    %v220 = vunpack.c.l.b16 %v140
    %v221 = vunpack.c.h.b16 %v140
    %v222 = vunpack.c.l.b16 %v141
    %v223 = vunpack.c.h.b16 %v141
    %v224 = vunpack.c.l.b16 %v142
    %v225 = vunpack.c.h.b16 %v142
    %v226 = vunpack.c.l.b16 %v143
    %v227 = vunpack.c.h.b16 %v143
    %v228 = vunpack.c.l.b16 %v144
    %v229 = vunpack.c.h.b16 %v144
    %v230 = vunpack.c.l.b16 %v145
    %v231 = vunpack.c.h.b16 %v145
    %v232 = vunpack.c.l.b16 %v146
    %v233 = vunpack.c.h.b16 %v146
    %v234 = vunpack.c.l.b16 %v147
    %v235 = vunpack.c.h.b16 %v147
    %v236 = vunpack.c.l.b16 %v148
    %v237 = vunpack.c.h.b16 %v148
    %v238 = vunpack.c.l.b16 %v149
    %v239 = vunpack.c.h.b16 %v149
    %v240 = vunpack.c.l.b16 %v150
    %v241 = vunpack.c.h.b16 %v150
    %v242 = vunpack.c.l.b16 %v151
    %v243 = vunpack.c.h.b16 %v151
    %v244 = vunpack.c.l.b16 %v152
    %v245 = vunpack.c.h.b16 %v152
    %v246 = vunpack.c.l.b16 %v153
    %v247 = vunpack.c.h.b16 %v153
    %v248 = vunpack.c.l.b16 %v154
    %v249 = vunpack.c.h.b16 %v154
    %v250 = vunpack.c.l.b16 %v155
    %v251 = vunpack.c.h.b16 %v155
    %v252 = vunpack.c.l.b16 %v156
    %v253 = vunpack.c.h.b16 %v156
    %v254 = vunpack.c.l.b16 %v157
    %v255 = vunpack.c.h.b16 %v157
    %v256 = vunpack.c.l.b16 %v158
    %v257 = vunpack.c.h.b16 %v158
    %v258 = vunpack.c.l.b16 %v159
    %v259 = vunpack.c.h.b16 %v159
    %v260 = vunpack.c.l.b16 %v160
    %v261 = vunpack.c.h.b16 %v160
    %v262 = vunpack.c.l.b16 %v161
    %v263 = vunpack.c.h.b16 %v161
    %v264 = vunpack.c.l.b16 %v162
    %v265 = vunpack.c.h.b16 %v162
    %v266 = vunpack.c.l.b16 %v163
    %v267 = vunpack.c.h.b16 %v163
    %v268 = vunpack.c.l.b16 %v164
    %v269 = vunpack.c.h.b16 %v164
    %v270 = vunpack.c.l.b16 %v165
    %v271 = vunpack.c.h.b16 %v165
    %v272 = vunpack.c.l.b16 %v166
    %v273 = vunpack.c.h.b16 %v166
    %v274 = vunpack.c.l.b16 %v167
    %v275 = vunpack.c.h.b16 %v167
    %v276 = vpack.c.b16 %v214, %v212
    %v277 = vpack.c.b16 %v215, %v213
    %v278 = vpack.c.b16 %v218, %v216
    %v279 = vpack.c.b16 %v219, %v217
    %v280 = vpack.c.b16 %v222, %v220
    %v281 = vpack.c.b16 %v223, %v221
    %v282 = vpack.c.b16 %v226, %v224
    %v283 = vpack.c.b16 %v227, %v225
    %v284 = vpack.c.b16 %v230, %v228
    %v285 = vpack.c.b16 %v231, %v229
    %v286 = vpack.c.b16 %v234, %v232
    %v287 = vpack.c.b16 %v235, %v233
    %v288 = vpack.c.b16 %v238, %v236
    %v289 = vpack.c.b16 %v239, %v237
    %v290 = vpack.c.b16 %v242, %v240
    %v291 = vpack.c.b16 %v243, %v241
    %v292 = vpack.c.b16 %v246, %v244
    %v293 = vpack.c.b16 %v247, %v245
    %v294 = vpack.c.b16 %v250, %v248
    %v295 = vpack.c.b16 %v251, %v249
    %v296 = vpack.c.b16 %v254, %v252
    %v297 = vpack.c.b16 %v255, %v253
    %v298 = vpack.c.b16 %v258, %v256
    %v299 = vpack.c.b16 %v259, %v257
    %v300 = vpack.c.b16 %v262, %v260
    %v301 = vpack.c.b16 %v263, %v261
    %v302 = vpack.c.b16 %v266, %v264
    %v303 = vpack.c.b16 %v267, %v265
    %v304 = vpack.c.b16 %v270, %v268
    %v305 = vpack.c.b16 %v271, %v269
    %v306 = vpack.c.b16 %v274, %v272
    %v307 = vpack.c.b16 %v275, %v273
    %340 = vmatprep.subr.bf16.mxu0 %v277
    %341 = vmatpush1.bf16.msra.mxu0 %v276
    %342 = vmatprep.subr.bf16.mxu0 %v279
    %343 = vmatpush1.bf16.msra.mxu0 %v278
    %344 = vmatprep.subr.bf16.mxu0 %v281
    %345 = vmatpush1.bf16.msra.mxu0 %v280
    %346 = vmatprep.subr.bf16.mxu0 %v283
    %347 = vmatpush1.bf16.msra.mxu0 %v282
    %348 = vmatprep.subr.bf16.mxu0 %v285
    %349 = vmatpush1.bf16.msra.mxu0 %v284
    %350 = vmatprep.subr.bf16.mxu0 %v287
    %351 = vmatpush1.bf16.msra.mxu0 %v286
    %352 = vmatprep.subr.bf16.mxu0 %v289
    %353 = vmatpush1.bf16.msra.mxu0 %v288
    %354 = vmatprep.subr.bf16.mxu0 %v291
    %355 = vmatpush1.bf16.msra.mxu0 %v290
    %356 = vmatprep.subr.bf16.mxu0 %v293
    %357 = vmatpush1.bf16.msra.mxu0 %v292
    %358 = vmatprep.subr.bf16.mxu0 %v295
    %359 = vmatpush1.bf16.msra.mxu0 %v294
    %360 = vmatprep.subr.bf16.mxu0 %v297
    %361 = vmatpush1.bf16.msra.mxu0 %v296
    %362 = vmatprep.subr.bf16.mxu0 %v299
    %363 = vmatpush1.bf16.msra.mxu0 %v298
    %364 = vmatprep.subr.bf16.mxu0 %v301
    %365 = vmatpush1.bf16.msra.mxu0 %v300
    %366 = vmatprep.subr.bf16.mxu0 %v303
    %367 = vmatpush1.bf16.msra.mxu0 %v302
    %368 = vmatprep.subr.bf16.mxu0 %v305
    %369 = vmatpush1.bf16.msra.mxu0 %v304
    %370 = vmatprep.subr.bf16.mxu0 %v307
    %371 = vmatpush1.bf16.msra.mxu0 %v306
    %372 = vmatprep.mubr.bf16.mxu0 %v135
    %373 = vmatmul.mubr.bf16.gmra.mrb[0].mxu0 %v134
    %v374 = vpop.f32.mrb[0].mxu0
    %v375 = vadd.f32 %v173, %v374
    %v376 = vpop.f32.mrb[0].mxu0
    %v377 = vadd.f32 %v177, %v376
    %v378 = vpop.f32.mrb[0].mxu0
    %v379 = vpop.f32.mrb[0].mxu0
    %380 = vdwg.mxu0
    %v381 = vmax.f32 %v375, 0.0
    %v382 = vmax.f32 %v377, 0.0
    %v383 = vpack.c.bf16 %v381, %v381
    %v384 = vpack.c.bf16 %v382, %v382
    %v385 = vld [vmem:[%s5] sm:$0xf]
    %v386 = vld [vmem:[%s5 + $0x4] sm:$0xf]
    %v387 = vld [vmem:[%s5 + $0x8] sm:$0xf]
    %v388 = vld [vmem:[%s5 + $0xc] sm:$0xf]
    %v389 = vld [vmem:[%s5 + $0x10] sm:$0xf]
    %v390 = vld [vmem:[%s5 + $0x14] sm:$0xf]
    %v391 = vld [vmem:[%s5 + $0x18] sm:$0xf]
    %v392 = vld [vmem:[%s5 + $0x1c] sm:$0xf]
    %v393 = vld [vmem:[%s5 + $0x20] sm:$0xf]
    %v394 = vld [vmem:[%s5 + $0x24] sm:$0xf]
    %v395 = vld [vmem:[%s5 + $0x28] sm:$0xf]
    %v396 = vld [vmem:[%s5 + $0x2c] sm:$0xf]
    %v397 = vld [vmem:[%s5 + $0x30] sm:$0xf]
    %v398 = vld [vmem:[%s5 + $0x34] sm:$0xf]
    %v399 = vld [vmem:[%s5 + $0x38] sm:$0xf]
    %v400 = vld [vmem:[%s5 + $0x3c] sm:$0xf]
    %v401 = vld [vmem:[%s5 + $0x40] sm:$0xf]
    %v402 = vld [vmem:[%s5 + $0x44] sm:$0xf]
    %v403 = vld [vmem:[%s5 + $0x48] sm:$0xf]
    %v404 = vld [vmem:[%s5 + $0x4c] sm:$0xf]
    %v405 = vld [vmem:[%s5 + $0x50] sm:$0xf]
    %v406 = vld [vmem:[%s5 + $0x54] sm:$0xf]
    %v407 = vld [vmem:[%s5 + $0x58] sm:$0xf]
    %v408 = vld [vmem:[%s5 + $0x5c] sm:$0xf]
    %v409 = vld [vmem:[%s5 + $0x60] sm:$0xf]
    %v410 = vld [vmem:[%s5 + $0x64] sm:$0xf]
    %v411 = vld [vmem:[%s5 + $0x68] sm:$0xf]
    %v412 = vld [vmem:[%s5 + $0x6c] sm:$0xf]
    %v413 = vld [vmem:[%s5 + $0x70] sm:$0xf]
    %v414 = vld [vmem:[%s5 + $0x74] sm:$0xf]
    %v415 = vld [vmem:[%s5 + $0x78] sm:$0xf]
    %v416 = vld [vmem:[%s5 + $0x7c] sm:$0xf]
    %v417 = vld [vmem:[#allocation5] sm:$0x1]
    %v419 = vlaneseq
    %v420 = vshrl.u32 %v419, 7
    %v421 = vsub.s32 0, %v420
    %v422 = vrot.slane %v417, %v421
    %v456 = vunpack.c.l.b16 %v385
    %v457 = vunpack.c.l.b16 %v386
    %v458 = vunpack.c.l.b16 %v387
    %v459 = vunpack.c.l.b16 %v388
    %v460 = vunpack.c.l.b16 %v389
    %v461 = vunpack.c.l.b16 %v390
    %v462 = vunpack.c.l.b16 %v391
    %v463 = vunpack.c.l.b16 %v392
    %v464 = vunpack.c.l.b16 %v393
    %v465 = vunpack.c.l.b16 %v394
    %v466 = vunpack.c.l.b16 %v395
    %v467 = vunpack.c.l.b16 %v396
    %v468 = vunpack.c.l.b16 %v397
    %v469 = vunpack.c.l.b16 %v398
    %v470 = vunpack.c.l.b16 %v399
    %v471 = vunpack.c.l.b16 %v400
    %v472 = vunpack.c.l.b16 %v401
    %v473 = vunpack.c.l.b16 %v402
    %v474 = vunpack.c.l.b16 %v403
    %v475 = vunpack.c.l.b16 %v404
    %v476 = vunpack.c.l.b16 %v405
    %v477 = vunpack.c.l.b16 %v406
    %v478 = vunpack.c.l.b16 %v407
    %v479 = vunpack.c.l.b16 %v408
    %v480 = vunpack.c.l.b16 %v409
    %v481 = vunpack.c.l.b16 %v410
    %v482 = vunpack.c.l.b16 %v411
    %v483 = vunpack.c.l.b16 %v412
    %v484 = vunpack.c.l.b16 %v413
    %v485 = vunpack.c.l.b16 %v414
    %v486 = vunpack.c.l.b16 %v415
    %v487 = vunpack.c.l.b16 %v416
    %v488 = vpack.c.b16 %v457, %v456
    %v489 = vpack.c.b16 %v459, %v458
    %v490 = vpack.c.b16 %v461, %v460
    %v491 = vpack.c.b16 %v463, %v462
    %v492 = vpack.c.b16 %v465, %v464
    %v493 = vpack.c.b16 %v467, %v466
    %v494 = vpack.c.b16 %v469, %v468
    %v495 = vpack.c.b16 %v471, %v470
    %v496 = vpack.c.b16 %v473, %v472
    %v497 = vpack.c.b16 %v475, %v474
    %v498 = vpack.c.b16 %v477, %v476
    %v499 = vpack.c.b16 %v479, %v478
    %v500 = vpack.c.b16 %v481, %v480
    %v501 = vpack.c.b16 %v483, %v482
    %v502 = vpack.c.b16 %v485, %v484
    %v503 = vpack.c.b16 %v487, %v486
    %520 = vmatprep.subr.bf16.mxu0 0
    %521 = vmatpush1.bf16.msra.mxu0 %v488
    %522 = vmatprep.subr.bf16.mxu0 0
    %523 = vmatpush1.bf16.msra.mxu0 %v489
    %524 = vmatprep.subr.bf16.mxu0 0
    %525 = vmatpush1.bf16.msra.mxu0 %v490
    %526 = vmatprep.subr.bf16.mxu0 0
    %527 = vmatpush1.bf16.msra.mxu0 %v491
    %528 = vmatprep.subr.bf16.mxu0 0
    %529 = vmatpush1.bf16.msra.mxu0 %v492
    %530 = vmatprep.subr.bf16.mxu0 0
    %531 = vmatpush1.bf16.msra.mxu0 %v493
    %532 = vmatprep.subr.bf16.mxu0 0
    %533 = vmatpush1.bf16.msra.mxu0 %v494
    %534 = vmatprep.subr.bf16.mxu0 0
    %535 = vmatpush1.bf16.msra.mxu0 %v495
    %536 = vmatprep.subr.bf16.mxu0 0
    %537 = vmatpush1.bf16.msra.mxu0 %v496
    %538 = vmatprep.subr.bf16.mxu0 0
    %539 = vmatpush1.bf16.msra.mxu0 %v497
    %540 = vmatprep.subr.bf16.mxu0 0
    %541 = vmatpush1.bf16.msra.mxu0 %v498
    %542 = vmatprep.subr.bf16.mxu0 0
    %543 = vmatpush1.bf16.msra.mxu0 %v499
    %544 = vmatprep.subr.bf16.mxu0 0
    %545 = vmatpush1.bf16.msra.mxu0 %v500
    %546 = vmatprep.subr.bf16.mxu0 0
    %547 = vmatpush1.bf16.msra.mxu0 %v501
    %548 = vmatprep.subr.bf16.mxu0 0
    %549 = vmatpush1.bf16.msra.mxu0 %v502
    %550 = vmatprep.subr.bf16.mxu0 0
    %551 = vmatpush1.bf16.msra.mxu0 %v503
    %552 = vmatprep.mubr.bf16.mxu0 %v384
    %553 = vmatmul.mubr.bf16.gmra.mrb[0].mxu0 %v383
    %v554 = vpop.f32.mrb[0].mxu0
    %v555 = vadd.f32 %v422, %v554
    %v556 = vpop.f32.mrb[0].mxu0
    %v557 = vpop.f32.mrb[0].mxu0
    %v558 = vpop.f32.mrb[0].mxu0
    %559 = vdwg.mxu0
    %v560 = vld [vmem:[%s7] sm:$0xf]
    %v561 = vld [vmem:[%s7 + $0x4] sm:$0xf]
    %v562 = vld [vmem:[%s7 + $0x8] sm:$0xf]
    %v563 = vld [vmem:[%s7 + $0xc] sm:$0xf]
    %v564 = vld [vmem:[%s7 + $0x10] sm:$0xf]
    %v565 = vld [vmem:[%s7 + $0x14] sm:$0xf]
    %v566 = vld [vmem:[%s7 + $0x18] sm:$0xf]
    %v567 = vld [vmem:[%s7 + $0x1c] sm:$0xf]
    %v568 = vld [vmem:[%s7 + $0x20] sm:$0xf]
    %v569 = vld [vmem:[%s7 + $0x24] sm:$0xf]
    %v570 = vld [vmem:[%s7 + $0x28] sm:$0xf]
    %v571 = vld [vmem:[%s7 + $0x2c] sm:$0xf]
    %v572 = vld [vmem:[%s7 + $0x30] sm:$0xf]
    %v573 = vld [vmem:[%s7 + $0x34] sm:$0xf]
    %v574 = vld [vmem:[%s7 + $0x38] sm:$0xf]
    %v575 = vld [vmem:[%s7 + $0x3c] sm:$0xf]
    %v576 = vld [vmem:[%s7 + $0x40] sm:$0xf]
    %v577 = vld [vmem:[%s7 + $0x44] sm:$0xf]
    %v578 = vld [vmem:[%s7 + $0x48] sm:$0xf]
    %v579 = vld [vmem:[%s7 + $0x4c] sm:$0xf]
    %v580 = vld [vmem:[%s7 + $0x50] sm:$0xf]
    %v581 = vld [vmem:[%s7 + $0x54] sm:$0xf]
    %v582 = vld [vmem:[%s7 + $0x58] sm:$0xf]
    %v583 = vld [vmem:[%s7 + $0x5c] sm:$0xf]
    %v584 = vld [vmem:[%s7 + $0x60] sm:$0xf]
    %v585 = vld [vmem:[%s7 + $0x64] sm:$0xf]
    %v586 = vld [vmem:[%s7 + $0x68] sm:$0xf]
    %v587 = vld [vmem:[%s7 + $0x6c] sm:$0xf]
    %v588 = vld [vmem:[%s7 + $0x70] sm:$0xf]
    %v589 = vld [vmem:[%s7 + $0x74] sm:$0xf]
    %v590 = vld [vmem:[%s7 + $0x78] sm:$0xf]
    %v591 = vld [vmem:[%s7 + $0x7c] sm:$0xf]
    %v592 = vld [vmem:[%s8] sm:$0x1]
    %v594 = vlaneseq
    %v595 = vshrl.u32 %v594, 7
    %v596 = vsub.s32 0, %v595
    %v597 = vrot.slane %v592, %v596
    %v631 = vunpack.c.l.b16 %v560
    %v632 = vunpack.c.l.b16 %v561
    %v633 = vunpack.c.l.b16 %v562
    %v634 = vunpack.c.l.b16 %v563
    %v635 = vunpack.c.l.b16 %v564
    %v636 = vunpack.c.l.b16 %v565
    %v637 = vunpack.c.l.b16 %v566
    %v638 = vunpack.c.l.b16 %v567
    %v639 = vunpack.c.l.b16 %v568
    %v640 = vunpack.c.l.b16 %v569
    %v641 = vunpack.c.l.b16 %v570
    %v642 = vunpack.c.l.b16 %v571
    %v643 = vunpack.c.l.b16 %v572
    %v644 = vunpack.c.l.b16 %v573
    %v645 = vunpack.c.l.b16 %v574
    %v646 = vunpack.c.l.b16 %v575
    %v647 = vunpack.c.l.b16 %v576
    %v648 = vunpack.c.l.b16 %v577
    %v649 = vunpack.c.l.b16 %v578
    %v650 = vunpack.c.l.b16 %v579
    %v651 = vunpack.c.l.b16 %v580
    %v652 = vunpack.c.l.b16 %v581
    %v653 = vunpack.c.l.b16 %v582
    %v654 = vunpack.c.l.b16 %v583
    %v655 = vunpack.c.l.b16 %v584
    %v656 = vunpack.c.l.b16 %v585
    %v657 = vunpack.c.l.b16 %v586
    %v658 = vunpack.c.l.b16 %v587
    %v659 = vunpack.c.l.b16 %v588
    %v660 = vunpack.c.l.b16 %v589
    %v661 = vunpack.c.l.b16 %v590
    %v662 = vunpack.c.l.b16 %v591
    %v663 = vpack.c.b16 %v632, %v631
    %v664 = vpack.c.b16 %v634, %v633
    %v665 = vpack.c.b16 %v636, %v635
    %v666 = vpack.c.b16 %v638, %v637
    %v667 = vpack.c.b16 %v640, %v639
    %v668 = vpack.c.b16 %v642, %v641
    %v669 = vpack.c.b16 %v644, %v643
    %v670 = vpack.c.b16 %v646, %v645
    %v671 = vpack.c.b16 %v648, %v647
    %v672 = vpack.c.b16 %v650, %v649
    %v673 = vpack.c.b16 %v652, %v651
    %v674 = vpack.c.b16 %v654, %v653
    %v675 = vpack.c.b16 %v656, %v655
    %v676 = vpack.c.b16 %v658, %v657
    %v677 = vpack.c.b16 %v660, %v659
    %v678 = vpack.c.b16 %v662, %v661
    %695 = vmatprep.subr.bf16.mxu0 0
    %696 = vmatpush1.bf16.msra.mxu0 %v663
    %697 = vmatprep.subr.bf16.mxu0 0
    %698 = vmatpush1.bf16.msra.mxu0 %v664
    %699 = vmatprep.subr.bf16.mxu0 0
    %700 = vmatpush1.bf16.msra.mxu0 %v665
    %701 = vmatprep.subr.bf16.mxu0 0
    %702 = vmatpush1.bf16.msra.mxu0 %v666
    %703 = vmatprep.subr.bf16.mxu0 0
    %704 = vmatpush1.bf16.msra.mxu0 %v667
    %705 = vmatprep.subr.bf16.mxu0 0
    %706 = vmatpush1.bf16.msra.mxu0 %v668
    %707 = vmatprep.subr.bf16.mxu0 0
    %708 = vmatpush1.bf16.msra.mxu0 %v669
    %709 = vmatprep.subr.bf16.mxu0 0
    %710 = vmatpush1.bf16.msra.mxu0 %v670
    %711 = vmatprep.subr.bf16.mxu0 0
    %712 = vmatpush1.bf16.msra.mxu0 %v671
    %713 = vmatprep.subr.bf16.mxu0 0
    %714 = vmatpush1.bf16.msra.mxu0 %v672
    %715 = vmatprep.subr.bf16.mxu0 0
    %716 = vmatpush1.bf16.msra.mxu0 %v673
    %717 = vmatprep.subr.bf16.mxu0 0
    %718 = vmatpush1.bf16.msra.mxu0 %v674
    %719 = vmatprep.subr.bf16.mxu0 0
    %720 = vmatpush1.bf16.msra.mxu0 %v675
    %721 = vmatprep.subr.bf16.mxu0 0
    %722 = vmatpush1.bf16.msra.mxu0 %v676
    %723 = vmatprep.subr.bf16.mxu0 0
    %724 = vmatpush1.bf16.msra.mxu0 %v677
    %725 = vmatprep.subr.bf16.mxu0 0
    %726 = vmatpush1.bf16.msra.mxu0 %v678
    %727 = vmatprep.mubr.bf16.mxu0 %v384
    %728 = vmatmul.mubr.bf16.gmra.mrb[0].mxu0 %v383
    %v729 = vpop.f32.mrb[0].mxu0
    %v730 = vadd.f32 %v597, %v729
    %v731 = vpop.f32.mrb[0].mxu0
    %v732 = vpop.f32.mrb[0].mxu0
    %v733 = vpop.f32.mrb[0].mxu0
    %734 = vdwg.mxu0
    %vm735 = vcmask 64512
    %736 = vst.msk [vmem:[#allocation7] sm:$0xff] %vm735, %v555
    %v737 = vmax.f32 %v730, -20.0
    %v738 = vmin.f32 %v737, 2.0
    %739 = vst.msk [vmem:[#allocation8] sm:$0xff] %vm735, %v738
    // Predicated region
    $region46: #{tpu_custom_call.1} parent=1 // pred_check
      _
    $region47: #{tpu_custom_call.1} parent=1 // pred_check_branch
      %741 = sbr.rel (0) target = $region49
    $region48: #{tpu_custom_call.1} parent=1 // pred_region
      %s743 = ssub.s32 128, 128
      %744 = vsyncadd [#allocation4], %s743
      %s746 = sshll.u32 [#allocation7], 4
      %s747 = int_to_ptr.vmem [resolvable:$true] %s746
      %749 = dma.vmem_to_hbm [thread:$0]  %s747, 128, %s9, [#allocation4]
    $region49: #{tpu_custom_call.1} parent=1 // pred_fallthru
      _
    // Predicated region
    $region50: #{tpu_custom_call.1} parent=1 // pred_check
      _
    $region51: #{tpu_custom_call.1} parent=1 // pred_check_branch
      %751 = sbr.rel (0) target = $region53
    $region52: #{tpu_custom_call.1} parent=1 // pred_region
      %s753 = ssub.s32 128, 128
      %754 = vsyncadd [#allocation9], %s753
      %s756 = sshll.u32 [#allocation8], 4
      %s757 = int_to_ptr.vmem [resolvable:$true] %s756
      %759 = dma.vmem_to_hbm [thread:$0]  %s757, 128, %s10, [#allocation9]
    $region53: #{tpu_custom_call.1} parent=1 // pred_fallthru
      _
    // Predicated region
    $region54: #{tpu_custom_call.1} parent=1 // pred_check
      _
    $region55: #{tpu_custom_call.1} parent=1 // pred_check_branch
      %761 = sbr.rel (0) target = $region57
    $region56: #{tpu_custom_call.1} parent=1 // pred_region
      %762 = dma.done [#allocation4], 128
    $region57: #{tpu_custom_call.1} parent=1 // pred_fallthru
      _
    // Predicated region
    $region58: #{tpu_custom_call.1} parent=1 // pred_check
      _
    $region59: #{tpu_custom_call.1} parent=1 // pred_check_branch
      %764 = sbr.rel (0) target = $region61
    $region60: #{tpu_custom_call.1} parent=1 // pred_region
      %765 = dma.done [#allocation9], 128
    $region61: #{tpu_custom_call.1} parent=1 // pred_fallthru
      _
    %766 = vsyncpa [#allocation3], 1
    %767 = vsyncpa [#allocation6], 1
    %768 = vsyncpa [#allocation4], 1
    %769 = vsyncpa [#allocation9], 1

</llo_original>
